<compile_context>
chip_gen: v5e
topology: v5e:2x2
jax: 0.10.0
libtpu: 0.0.40
codegen_flags: <defaults>
</compile_context>

<pallas_src>
import math

import jax
import jax.numpy as jnp
from jax.experimental import pallas as pl
from jax.experimental.pallas import tpu as pltpu

_INV_SQRT2 = 0.7071067811865476
_LN_EPS = 1e-5
_OUT_PAD = 128  # lane-dense padded width of the logits output


def _pad128(n):
    return ((n + 127) // 128) * 128


def _gelu(x):
    # exact (erf-based) GELU -- matches torch.nn.GELU() default
    return 0.5 * x * (1.0 + jax.lax.erf(x * _INV_SQRT2))


def _layernorm(x, gamma, beta):
    # single-pass statistics: var = E[x^2] - E[x]^2 (biased, eps inside rsqrt)
    mu = jnp.mean(x, axis=-1, keepdims=True)
    ms = jnp.mean(x * x, axis=-1, keepdims=True)
    var = jnp.maximum(ms - mu * mu, 0.0)
    return (x - mu) * jax.lax.rsqrt(var + _LN_EPS) * gamma + beta


# ----------------------------------------------------------------------------
# Kernel
# ----------------------------------------------------------------------------
def make_kernel(H, H2, H2P, offA, offB):
    """Kernel closure over static dims / packed-buffer offsets."""

    def kernel(x_ref, w1_ref, wA_ref, wB_ref, vec_ref, out_ref, feat_ref):
        f32 = jnp.float32
        x = x_ref[...].astype(f32)

        def rH(i):      # (1, H) row-vector parameter (rows 0..11)
            return vec_ref[i:i + 1, :H]

        def rH2(i):     # (1, H2) row-vector parameter (rows 12..20)
            return vec_ref[12 + i:13 + i, :H2]

        def mm(a, b):
            return jnp.dot(a, b, preferred_element_type=f32)

        # ---- feature extractor stage 1: Linear(D,H) -> LN -> GELU ----
        h = _gelu(_layernorm(mm(x, w1_ref[...]) + rH(0), rH(1), rH(2)))

        # ---- ResidualBlock(H) ----
        a1 = wA_ref[:, offA['ra_w1']:offA['ra_w1'] + H]
        a2 = wA_ref[:, offA['ra_w2']:offA['ra_w2'] + H]
        t = _gelu(_layernorm(mm(h, a1) + rH(3), rH(4), rH(5)))
        t = _layernorm(mm(t, a2) + rH(6), rH(7), rH(8))
        h = h + t  # Dropout(0.2) -> identity (inference)

        # ---- feature extractor stage 2: Linear(H, H/2) -> LN -> GELU ----
        w2 = wA_ref[:, offA['w2']:offA['w2'] + H2]
        h = _gelu(_layernorm(mm(h, w2) + rH2(0), rH2(1), rH2(2)))

        # ---- ResidualBlock(H/2) ----
        b1w = wB_ref[:, offB['rb_w1']:offB['rb_w1'] + H2]
        b2w = wB_ref[:, offB['rb_w2']:offB['rb_w2'] + H2]
        t = _gelu(_layernorm(mm(h, b1w) + rH2(3), rH2(4), rH2(5)))
        t = _layernorm(mm(t, b2w) + rH2(6), rH2(7), rH2(8))
        h = h + t  # Dropout(0.2) -> identity (inference)

        # features output: lane-dense padded store
        if H2 == H2P:
            feat_ref[...] = h.astype(feat_ref.dtype)
        else:
            pad = jnp.zeros((h.shape[0], H2P - H2), f32)
            feat_ref[...] = jnp.concatenate([h, pad], axis=-1).astype(feat_ref.dtype)

        # ---- 4 classifier heads, fused ----
        # single matmul for all heads' first Linear: (B,H2)@(H2, 4*H4)
        wc1 = wB_ref[:, offB['wc1']:offB['wc1'] + H]
        zc = mm(h, wc1) + rH(9)                                  # (TB, 4*H4)
        # per-head LayerNorm stats via block-diagonal averaging matmul
        avg = wA_ref[:, offA['avg']:offA['avg'] + H]             # (4*H4, 4*H4)
        mu = mm(zc, avg)
        ms = mm(zc * zc, avg)
        var = jnp.maximum(ms - mu * mu, 0.0)
        zn = (zc - mu) * jax.lax.rsqrt(var + _LN_EPS) * rH(10) + rH(11)
        za = _gelu(zn)
        # block-diagonal final projection -> lane-dense (TB, 128) logits slab
        wout = wA_ref[:, offA['wout']:offA['wout'] + _OUT_PAD]
        bc2 = vec_ref[21:22, :_OUT_PAD]
        out = mm(za, wout) + bc2
        out_ref[...] = out.astype(out_ref.dtype)

    return kernel


# ----------------------------------------------------------------------------
# Parameters (deterministic synthetic, shapes follow the torch __init__)
# ----------------------------------------------------------------------------
def init_params(key, input_size, hidden_size):
    H, H2, H4 = hidden_size, hidden_size // 2, hidden_size // 4
    keys = iter(jax.random.split(key, 64))

    def lin(din, dout):
        s = 1.0 / math.sqrt(din)
        w = jax.random.uniform(next(keys), (din, dout), jnp.float32, -s, s)
        b = jax.random.uniform(next(keys), (dout,), jnp.float32, -s, s)
        return w, b

    def ln(d):
        return jnp.ones((d,), jnp.float32), jnp.zeros((d,), jnp.float32)

    raw = {}
    raw['w1'], raw['b1'] = lin(input_size, H)
    raw['g1'], raw['be1'] = ln(H)
    raw['ra_w1'], raw['ra_b1'] = lin(H, H)
    raw['ra_g1'], raw['ra_be1'] = ln(H)
    raw['ra_w2'], raw['ra_b2'] = lin(H, H)
    raw['ra_g2'], raw['ra_be2'] = ln(H)
    raw['w2'], raw['b2'] = lin(H, H2)
    raw['g2'], raw['be2'] = ln(H2)
    raw['rb_w1'], raw['rb_b1'] = lin(H2, H2)
    raw['rb_g1'], raw['rb_be1'] = ln(H2)
    raw['rb_w2'], raw['rb_b2'] = lin(H2, H2)
    raw['rb_g2'], raw['rb_be2'] = ln(H2)

    wc1, bc1, cg, cbe, wc2, bc2 = [], [], [], [], [], []
    for _ in range(4):
        w, b = lin(H2, H4)
        wc1.append(w)
        bc1.append(b)
        g, be = ln(H4)
        cg.append(g)
        cbe.append(be)
        wo, bo = lin(H4, 1)
        wc2.append(wo[:, 0])
        bc2.append(bo[0])
    raw['wc1'] = jnp.stack(wc1)    # (4, H2, H4)
    raw['bc1'] = jnp.stack(bc1)    # (4, H4)
    raw['cg'] = jnp.stack(cg)      # (4, H4)
    raw['cbe'] = jnp.stack(cbe)    # (4, H4)
    raw['wc2'] = jnp.stack(wc2)    # (4, H4)
    raw['bc2'] = jnp.stack(bc2)    # (4,)
    return raw


def pack_params(raw, hidden_size):
    """Pack the ~30 logical parameters into a few lane-aligned VMEM slabs."""
    H, H2, H4 = hidden_size, hidden_size // 2, hidden_size // 4
    Hp, H2p = _pad128(H), _pad128(H2)
    W = max(H, _OUT_PAD)   # width of the row-vector stack

    def padc(w, width):
        return jnp.pad(w, ((0, 0), (0, width - w.shape[1])))

    def row(v):
        return jnp.pad(v, (0, W - v.shape[0]))

    # block-diagonal averaging matrix for the fused per-head LayerNorm
    avg_blk = jnp.kron(jnp.eye(4, dtype=jnp.float32),
                       jnp.full((H4, H4), 1.0 / H4, jnp.float32))   # (4*H4, 4*H4)

    # block-diagonal final head projection, padded to 128 lanes
    wout = jnp.zeros((H, _OUT_PAD), jnp.float32)
    for i in range(4):
        wout = wout.at[i * H4:(i + 1) * H4, i].set(raw['wc2'][i])

    wc1_flat = raw['wc1'].transpose(1, 0, 2).reshape(H2, 4 * H4)    # (H2, 4*H4)

    # slab of H-row weights
    wA = jnp.concatenate([padc(raw['ra_w1'], Hp), padc(raw['ra_w2'], Hp),
                          padc(raw['w2'], H2p), padc(avg_blk, Hp), wout], axis=1)
    offA = {'ra_w1': 0, 'ra_w2': Hp, 'w2': 2 * Hp,
            'avg': 2 * Hp + H2p, 'wout': 3 * Hp + H2p}

    # slab of H/2-row weights
    wB = jnp.concatenate([padc(raw['rb_w1'], H2p), padc(raw['rb_w2'], H2p),
                          padc(wc1_flat, Hp)], axis=1)
    offB = {'rb_w1': 0, 'rb_w2': H2p, 'wc1': 2 * H2p}

    # single row-vector stack: rows 0-11 width H, rows 12-20 width H2,
    # row 21 is the padded head bias (width 128); all padded to W.
    rows = [raw['b1'], raw['g1'], raw['be1'],
            raw['ra_b1'], raw['ra_g1'], raw['ra_be1'],
            raw['ra_b2'], raw['ra_g2'], raw['ra_be2'],
            raw['bc1'].reshape(-1), raw['cg'].reshape(-1),
            raw['cbe'].reshape(-1),
            raw['b2'], raw['g2'], raw['be2'],
            raw['rb_b1'], raw['rb_g1'], raw['rb_be1'],
            raw['rb_b2'], raw['rb_g2'], raw['rb_be2'],
            jnp.pad(raw['bc2'], (0, _OUT_PAD - 4))]
    vec = jnp.stack([row(r) for r in rows])                          # (22, W)

    return dict(w1=raw['w1'], wA=wA, wB=wB, vec=vec, offA=offA, offB=offB)


# ----------------------------------------------------------------------------
# Forward wrapper
# ----------------------------------------------------------------------------
def improved_eegnet_forward(x, packed, hidden_size):
    B, D = x.shape
    H, H2 = hidden_size, hidden_size // 2
    H2p = _pad128(H2)

    # batch tile: small batches run as a single block; large batches are tiled
    # and pipelined / megacore-sharded along the "parallel" grid axis.
    TB = 256 if B >= 256 else max(8, ((B + 7) // 8) * 8)
    Bp = ((B + TB - 1) // TB) * TB
    xp = jnp.pad(x, ((0, Bp - B), (0, 0))) if Bp != B else x

    kernel = make_kernel(H, H2, H2p, packed['offA'], packed['offB'])

    def resident(arr):  # weight stays on the same block for every grid step
        return pl.BlockSpec(arr.shape, lambda i: (0, 0))

    out_pad, feat_pad = pl.pallas_call(
        kernel,
        out_shape=(jax.ShapeDtypeStruct((Bp, _OUT_PAD), jnp.float32),
                   jax.ShapeDtypeStruct((Bp, H2p), jnp.float32)),
        grid=(Bp // TB,),
        in_specs=[pl.BlockSpec((TB, D), lambda i: (i, 0)),
                  resident(packed['w1']),
                  resident(packed['wA']),
                  resident(packed['wB']),
                  resident(packed['vec'])],
        out_specs=(pl.BlockSpec((TB, _OUT_PAD), lambda i: (i, 0)),
                   pl.BlockSpec((TB, H2p), lambda i: (i, 0))),
        compiler_params=pltpu.CompilerParams(
            dimension_semantics=("parallel",)),
    )(xp, packed['w1'], packed['wA'], packed['wB'], packed['vec'])

    return out_pad[:B, :4], feat_pad[:B, :H2]


# ----------------------------------------------------------------------------
# Pure-JAX reference (mirrors the torch module) for correctness checking
# ----------------------------------------------------------------------------
def reference_forward(x, raw):
    def ln(v, g, b):
        mu = v.mean(-1, keepdims=True)
        var = ((v - mu) ** 2).mean(-1, keepdims=True)
        return (v - mu) / jnp.sqrt(var + _LN_EPS) * g + b

    h = _gelu(ln(x @ raw['w1'] + raw['b1'], raw['g1'], raw['be1']))
    t = _gelu(ln(h @ raw['ra_w1'] + raw['ra_b1'], raw['ra_g1'], raw['ra_be1']))
    t = ln(t @ raw['ra_w2'] + raw['ra_b2'], raw['ra_g2'], raw['ra_be2'])
    h = h + t
    h = _gelu(ln(h @ raw['w2'] + raw['b2'], raw['g2'], raw['be2']))
    t = _gelu(ln(h @ raw['rb_w1'] + raw['rb_b1'], raw['rb_g1'], raw['rb_be1']))
    t = ln(t @ raw['rb_w2'] + raw['rb_b2'], raw['rb_g2'], raw['rb_be2'])
    feat = h + t
    logits = []
    for i in range(4):
        z = _gelu(ln(feat @ raw['wc1'][i] + raw['bc1'][i],
                     raw['cg'][i], raw['cbe'][i]))
        logits.append(z @ raw['wc2'][i][:, None] + raw['bc2'][i])
    return jnp.concatenate(logits, axis=1), feat


if __name__ == "__main__":
    B, INPUT_SIZE, HIDDEN = 8, 16, 32
    key = jax.random.PRNGKey(0)
    k_x, k_p = jax.random.split(key)
    x = jax.random.normal(k_x, (B, INPUT_SIZE), dtype=jnp.float32)

    raw = init_params(k_p, INPUT_SIZE, HIDDEN)
    packed = pack_params(raw, HIDDEN)

    outputs, features = improved_eegnet_forward(x, packed, HIDDEN)
    jax.block_until_ready((outputs, features))
    assert outputs.shape == (B, 4) and features.shape == (B, HIDDEN // 2)

    ref_out, ref_feat = reference_forward(x, raw)
    assert jnp.allclose(outputs, ref_out, atol=3e-2, rtol=3e-2)
    assert jnp.allclose(features, ref_feat, atol=3e-2, rtol=3e-2)
    print("KERNEL_OK")
</pallas_src>

<mosaic_0001>
module attributes {stable_mosaic.version = 11 : i64} {
  func.func @kernel(%arg0: i32, %arg1: memref<8x16xf32, #tpu.memory_space<vmem>>, %arg2: memref<16x32xf32, #tpu.memory_space<vmem>>, %arg3: memref<32x640xf32, #tpu.memory_space<vmem>>, %arg4: memref<16x384xf32, #tpu.memory_space<vmem>>, %arg5: memref<22x128xf32, #tpu.memory_space<vmem>>, %arg6: memref<8x128xf32, #tpu.memory_space<vmem>>, %arg7: memref<8x128xf32, #tpu.memory_space<vmem>>) attributes {dimension_semantics = [#tpu.dimension_semantics<parallel>], iteration_bounds = array<i64: 1>, scalar_prefetch = 0 : i64, scratch_operands = 0 : i64, tpu.core_type = #tpu.core_type<tc>, window_params = [{transform_indices = @transform_0, window_bounds = array<i64: 8, 16>}, {pipeline_mode = #tpu.pipeline_mode<synchronous>, transform_indices = @transform_1, window_bounds = array<i64: 16, 32>}, {pipeline_mode = #tpu.pipeline_mode<synchronous>, transform_indices = @transform_2, window_bounds = array<i64: 32, 640>}, {pipeline_mode = #tpu.pipeline_mode<synchronous>, transform_indices = @transform_3, window_bounds = array<i64: 16, 384>}, {pipeline_mode = #tpu.pipeline_mode<synchronous>, transform_indices = @transform_4, window_bounds = array<i64: 22, 128>}, {transform_indices = @transform_5, window_bounds = array<i64: 8, 128>}, {transform_indices = @transform_6, window_bounds = array<i64: 8, 128>}]} {
    %c0 = arith.constant 0 : index
    %c0_0 = arith.constant 0 : index
    %0 = vector.load %arg1[%c0, %c0_0] : memref<8x16xf32, #tpu.memory_space<vmem>>, vector<8x16xf32>
    %c0_1 = arith.constant 0 : index
    %c0_2 = arith.constant 0 : index
    %1 = vector.load %arg2[%c0_1, %c0_2] : memref<16x32xf32, #tpu.memory_space<vmem>>, vector<16x32xf32>
    %cst = arith.constant dense<0.000000e+00> : vector<8x32xf32>
    %2 = tpu.matmul %0, %1, %cst {dimension_numbers = #tpu.dot_dimension_numbers<[1], [0], [0], [1], [0, 0, 1, 1], [], []>} : vector<8x16xf32>, vector<16x32xf32>, vector<8x32xf32> -> vector<8x32xf32>
    %c0_3 = arith.constant 0 : index
    %c0_4 = arith.constant 0 : index
    %3 = vector.load %arg5[%c0_3, %c0_4] : memref<22x128xf32, #tpu.memory_space<vmem>>, vector<1x32xf32>
    %4 = vector.broadcast %3 : vector<1x32xf32> to vector<8x32xf32>
    %5 = arith.addf %2, %4 : vector<8x32xf32>
    %c1 = arith.constant 1 : index
    %c0_5 = arith.constant 0 : index
    %6 = vector.load %arg5[%c1, %c0_5] : memref<22x128xf32, #tpu.memory_space<vmem>>, vector<1x32xf32>
    %c2 = arith.constant 2 : index
    %c0_6 = arith.constant 0 : index
    %7 = vector.load %arg5[%c2, %c0_6] : memref<22x128xf32, #tpu.memory_space<vmem>>, vector<1x32xf32>
    %cst_7 = arith.constant dense<0.000000e+00> : vector<8xf32>
    %8 = vector.multi_reduction <add>, %5, %cst_7 [1] : vector<8x32xf32> to vector<8xf32>
    %9 = vector.shape_cast %8 : vector<8xf32> to vector<8x1xf32>
    %cst_8 = arith.constant 3.200000e+01 : f32
    %10 = vector.broadcast %cst_8 : f32 to vector<8x1xf32>
    %11 = arith.divf %9, %10 : vector<8x1xf32>
    %12 = arith.mulf %5, %5 : vector<8x32xf32>
    %cst_9 = arith.constant dense<0.000000e+00> : vector<8xf32>
    %13 = vector.multi_reduction <add>, %12, %cst_9 [1] : vector<8x32xf32> to vector<8xf32>
    %14 = vector.shape_cast %13 : vector<8xf32> to vector<8x1xf32>
    %cst_10 = arith.constant 3.200000e+01 : f32
    %15 = vector.broadcast %cst_10 : f32 to vector<8x1xf32>
    %16 = arith.divf %14, %15 : vector<8x1xf32>
    %17 = arith.mulf %11, %11 : vector<8x1xf32>
    %18 = arith.subf %16, %17 : vector<8x1xf32>
    %cst_11 = arith.constant 0.000000e+00 : f32
    %19 = vector.broadcast %cst_11 : f32 to vector<8x1xf32>
    %20 = arith.maximumf %18, %19 : vector<8x1xf32>
    %21 = vector.broadcast %11 : vector<8x1xf32> to vector<8x32xf32>
    %22 = arith.subf %5, %21 : vector<8x32xf32>
    %cst_12 = arith.constant 9.99999974E-6 : f32
    %23 = vector.broadcast %cst_12 : f32 to vector<8x1xf32>
    %24 = arith.addf %20, %23 : vector<8x1xf32>
    %25 = math.rsqrt %24 : vector<8x1xf32>
    %26 = vector.broadcast %25 : vector<8x1xf32> to vector<8x32xf32>
    %27 = arith.mulf %22, %26 : vector<8x32xf32>
    %28 = vector.broadcast %6 : vector<1x32xf32> to vector<8x32xf32>
    %29 = arith.mulf %27, %28 : vector<8x32xf32>
    %30 = vector.broadcast %7 : vector<1x32xf32> to vector<8x32xf32>
    %31 = arith.addf %29, %30 : vector<8x32xf32>
    %cst_13 = arith.constant 5.000000e-01 : f32
    %32 = vector.broadcast %cst_13 : f32 to vector<8x32xf32>
    %33 = arith.mulf %32, %31 : vector<8x32xf32>
    %cst_14 = arith.constant 0.707106769 : f32
    %34 = vector.broadcast %cst_14 : f32 to vector<8x32xf32>
    %35 = arith.mulf %31, %34 : vector<8x32xf32>
    %36 = math.erf %35 : vector<8x32xf32>
    %cst_15 = arith.constant 1.000000e+00 : f32
    %37 = vector.broadcast %cst_15 : f32 to vector<8x32xf32>
    %38 = arith.addf %37, %36 : vector<8x32xf32>
    %39 = arith.mulf %33, %38 : vector<8x32xf32>
    %c0_16 = arith.constant 0 : index
    %c0_17 = arith.constant 0 : index
    %40 = vector.load %arg3[%c0_16, %c0_17] : memref<32x640xf32, #tpu.memory_space<vmem>>, vector<32x32xf32>
    %c0_18 = arith.constant 0 : index
    %c128 = arith.constant 128 : index
    %41 = vector.load %arg3[%c0_18, %c128] : memref<32x640xf32, #tpu.memory_space<vmem>>, vector<32x32xf32>
    %cst_19 = arith.constant dense<0.000000e+00> : vector<8x32xf32>
    %42 = tpu.matmul %39, %40, %cst_19 {dimension_numbers = #tpu.dot_dimension_numbers<[1], [0], [0], [1], [0, 0, 1, 1], [], []>} : vector<8x32xf32>, vector<32x32xf32>, vector<8x32xf32> -> vector<8x32xf32>
    %c3 = arith.constant 3 : index
    %c0_20 = arith.constant 0 : index
    %43 = vector.load %arg5[%c3, %c0_20] : memref<22x128xf32, #tpu.memory_space<vmem>>, vector<1x32xf32>
    %44 = vector.broadcast %43 : vector<1x32xf32> to vector<8x32xf32>
    %45 = arith.addf %42, %44 : vector<8x32xf32>
    %c4 = arith.constant 4 : index
    %c0_21 = arith.constant 0 : index
    %46 = vector.load %arg5[%c4, %c0_21] : memref<22x128xf32, #tpu.memory_space<vmem>>, vector<1x32xf32>
    %c5 = arith.constant 5 : index
    %c0_22 = arith.constant 0 : index
    %47 = vector.load %arg5[%c5, %c0_22] : memref<22x128xf32, #tpu.memory_space<vmem>>, vector<1x32xf32>
    %cst_23 = arith.constant dense<0.000000e+00> : vector<8xf32>
    %48 = vector.multi_reduction <add>, %45, %cst_23 [1] : vector<8x32xf32> to vector<8xf32>
    %49 = vector.shape_cast %48 : vector<8xf32> to vector<8x1xf32>
    %cst_24 = arith.constant 3.200000e+01 : f32
    %50 = vector.broadcast %cst_24 : f32 to vector<8x1xf32>
    %51 = arith.divf %49, %50 : vector<8x1xf32>
    %52 = arith.mulf %45, %45 : vector<8x32xf32>
    %cst_25 = arith.constant dense<0.000000e+00> : vector<8xf32>
    %53 = vector.multi_reduction <add>, %52, %cst_25 [1] : vector<8x32xf32> to vector<8xf32>
    %54 = vector.shape_cast %53 : vector<8xf32> to vector<8x1xf32>
    %cst_26 = arith.constant 3.200000e+01 : f32
    %55 = vector.broadcast %cst_26 : f32 to vector<8x1xf32>
    %56 = arith.divf %54, %55 : vector<8x1xf32>
    %57 = arith.mulf %51, %51 : vector<8x1xf32>
    %58 = arith.subf %56, %57 : vector<8x1xf32>
    %cst_27 = arith.constant 0.000000e+00 : f32
    %59 = vector.broadcast %cst_27 : f32 to vector<8x1xf32>
    %60 = arith.maximumf %58, %59 : vector<8x1xf32>
    %61 = vector.broadcast %51 : vector<8x1xf32> to vector<8x32xf32>
    %62 = arith.subf %45, %61 : vector<8x32xf32>
    %cst_28 = arith.constant 9.99999974E-6 : f32
    %63 = vector.broadcast %cst_28 : f32 to vector<8x1xf32>
    %64 = arith.addf %60, %63 : vector<8x1xf32>
    %65 = math.rsqrt %64 : vector<8x1xf32>
    %66 = vector.broadcast %65 : vector<8x1xf32> to vector<8x32xf32>
    %67 = arith.mulf %62, %66 : vector<8x32xf32>
    %68 = vector.broadcast %46 : vector<1x32xf32> to vector<8x32xf32>
    %69 = arith.mulf %67, %68 : vector<8x32xf32>
    %70 = vector.broadcast %47 : vector<1x32xf32> to vector<8x32xf32>
    %71 = arith.addf %69, %70 : vector<8x32xf32>
    %cst_29 = arith.constant 5.000000e-01 : f32
    %72 = vector.broadcast %cst_29 : f32 to vector<8x32xf32>
    %73 = arith.mulf %72, %71 : vector<8x32xf32>
    %cst_30 = arith.constant 0.707106769 : f32
    %74 = vector.broadcast %cst_30 : f32 to vector<8x32xf32>
    %75 = arith.mulf %71, %74 : vector<8x32xf32>
    %76 = math.erf %75 : vector<8x32xf32>
    %cst_31 = arith.constant 1.000000e+00 : f32
    %77 = vector.broadcast %cst_31 : f32 to vector<8x32xf32>
    %78 = arith.addf %77, %76 : vector<8x32xf32>
    %79 = arith.mulf %73, %78 : vector<8x32xf32>
    %cst_32 = arith.constant dense<0.000000e+00> : vector<8x32xf32>
    %80 = tpu.matmul %79, %41, %cst_32 {dimension_numbers = #tpu.dot_dimension_numbers<[1], [0], [0], [1], [0, 0, 1, 1], [], []>} : vector<8x32xf32>, vector<32x32xf32>, vector<8x32xf32> -> vector<8x32xf32>
    %c6 = arith.constant 6 : index
    %c0_33 = arith.constant 0 : index
    %81 = vector.load %arg5[%c6, %c0_33] : memref<22x128xf32, #tpu.memory_space<vmem>>, vector<1x32xf32>
    %82 = vector.broadcast %81 : vector<1x32xf32> to vector<8x32xf32>
    %83 = arith.addf %80, %82 : vector<8x32xf32>
    %c7 = arith.constant 7 : index
    %c0_34 = arith.constant 0 : index
    %84 = vector.load %arg5[%c7, %c0_34] : memref<22x128xf32, #tpu.memory_space<vmem>>, vector<1x32xf32>
    %c8 = arith.constant 8 : index
    %c0_35 = arith.constant 0 : index
    %85 = vector.load %arg5[%c8, %c0_35] : memref<22x128xf32, #tpu.memory_space<vmem>>, vector<1x32xf32>
    %cst_36 = arith.constant dense<0.000000e+00> : vector<8xf32>
    %86 = vector.multi_reduction <add>, %83, %cst_36 [1] : vector<8x32xf32> to vector<8xf32>
    %87 = vector.shape_cast %86 : vector<8xf32> to vector<8x1xf32>
    %cst_37 = arith.constant 3.200000e+01 : f32
    %88 = vector.broadcast %cst_37 : f32 to vector<8x1xf32>
    %89 = arith.divf %87, %88 : vector<8x1xf32>
    %90 = arith.mulf %83, %83 : vector<8x32xf32>
    %cst_38 = arith.constant dense<0.000000e+00> : vector<8xf32>
    %91 = vector.multi_reduction <add>, %90, %cst_38 [1] : vector<8x32xf32> to vector<8xf32>
    %92 = vector.shape_cast %91 : vector<8xf32> to vector<8x1xf32>
    %cst_39 = arith.constant 3.200000e+01 : f32
    %93 = vector.broadcast %cst_39 : f32 to vector<8x1xf32>
    %94 = arith.divf %92, %93 : vector<8x1xf32>
    %95 = arith.mulf %89, %89 : vector<8x1xf32>
    %96 = arith.subf %94, %95 : vector<8x1xf32>
    %cst_40 = arith.constant 0.000000e+00 : f32
    %97 = vector.broadcast %cst_40 : f32 to vector<8x1xf32>
    %98 = arith.maximumf %96, %97 : vector<8x1xf32>
    %99 = vector.broadcast %89 : vector<8x1xf32> to vector<8x32xf32>
    %100 = arith.subf %83, %99 : vector<8x32xf32>
    %cst_41 = arith.constant 9.99999974E-6 : f32
    %101 = vector.broadcast %cst_41 : f32 to vector<8x1xf32>
    %102 = arith.addf %98, %101 : vector<8x1xf32>
    %103 = math.rsqrt %102 : vector<8x1xf32>
    %104 = vector.broadcast %103 : vector<8x1xf32> to vector<8x32xf32>
    %105 = arith.mulf %100, %104 : vector<8x32xf32>
    %106 = vector.broadcast %84 : vector<1x32xf32> to vector<8x32xf32>
    %107 = arith.mulf %105, %106 : vector<8x32xf32>
    %108 = vector.broadcast %85 : vector<1x32xf32> to vector<8x32xf32>
    %109 = arith.addf %107, %108 : vector<8x32xf32>
    %110 = arith.addf %39, %109 : vector<8x32xf32>
    %c0_42 = arith.constant 0 : index
    %c256 = arith.constant 256 : index
    %111 = vector.load %arg3[%c0_42, %c256] : memref<32x640xf32, #tpu.memory_space<vmem>>, vector<32x16xf32>
    %cst_43 = arith.constant dense<0.000000e+00> : vector<8x16xf32>
    %112 = tpu.matmul %110, %111, %cst_43 {dimension_numbers = #tpu.dot_dimension_numbers<[1], [0], [0], [1], [0, 0, 1, 1], [], []>} : vector<8x32xf32>, vector<32x16xf32>, vector<8x16xf32> -> vector<8x16xf32>
    %c12 = arith.constant 12 : index
    %c0_44 = arith.constant 0 : index
    %113 = vector.load %arg5[%c12, %c0_44] : memref<22x128xf32, #tpu.memory_space<vmem>>, vector<1x16xf32>
    %114 = vector.broadcast %113 : vector<1x16xf32> to vector<8x16xf32>
    %115 = arith.addf %112, %114 : vector<8x16xf32>
    %c13 = arith.constant 13 : index
    %c0_45 = arith.constant 0 : index
    %116 = vector.load %arg5[%c13, %c0_45] : memref<22x128xf32, #tpu.memory_space<vmem>>, vector<1x16xf32>
    %c14 = arith.constant 14 : index
    %c0_46 = arith.constant 0 : index
    %117 = vector.load %arg5[%c14, %c0_46] : memref<22x128xf32, #tpu.memory_space<vmem>>, vector<1x16xf32>
    %cst_47 = arith.constant dense<0.000000e+00> : vector<8xf32>
    %118 = vector.multi_reduction <add>, %115, %cst_47 [1] : vector<8x16xf32> to vector<8xf32>
    %119 = vector.shape_cast %118 : vector<8xf32> to vector<8x1xf32>
    %cst_48 = arith.constant 1.600000e+01 : f32
    %120 = vector.broadcast %cst_48 : f32 to vector<8x1xf32>
    %121 = arith.divf %119, %120 : vector<8x1xf32>
    %122 = arith.mulf %115, %115 : vector<8x16xf32>
    %cst_49 = arith.constant dense<0.000000e+00> : vector<8xf32>
    %123 = vector.multi_reduction <add>, %122, %cst_49 [1] : vector<8x16xf32> to vector<8xf32>
    %124 = vector.shape_cast %123 : vector<8xf32> to vector<8x1xf32>
    %cst_50 = arith.constant 1.600000e+01 : f32
    %125 = vector.broadcast %cst_50 : f32 to vector<8x1xf32>
    %126 = arith.divf %124, %125 : vector<8x1xf32>
    %127 = arith.mulf %121, %121 : vector<8x1xf32>
    %128 = arith.subf %126, %127 : vector<8x1xf32>
    %cst_51 = arith.constant 0.000000e+00 : f32
    %129 = vector.broadcast %cst_51 : f32 to vector<8x1xf32>
    %130 = arith.maximumf %128, %129 : vector<8x1xf32>
    %131 = vector.broadcast %121 : vector<8x1xf32> to vector<8x16xf32>
    %132 = arith.subf %115, %131 : vector<8x16xf32>
    %cst_52 = arith.constant 9.99999974E-6 : f32
    %133 = vector.broadcast %cst_52 : f32 to vector<8x1xf32>
    %134 = arith.addf %130, %133 : vector<8x1xf32>
    %135 = math.rsqrt %134 : vector<8x1xf32>
    %136 = vector.broadcast %135 : vector<8x1xf32> to vector<8x16xf32>
    %137 = arith.mulf %132, %136 : vector<8x16xf32>
    %138 = vector.broadcast %116 : vector<1x16xf32> to vector<8x16xf32>
    %139 = arith.mulf %137, %138 : vector<8x16xf32>
    %140 = vector.broadcast %117 : vector<1x16xf32> to vector<8x16xf32>
    %141 = arith.addf %139, %140 : vector<8x16xf32>
    %cst_53 = arith.constant 5.000000e-01 : f32
    %142 = vector.broadcast %cst_53 : f32 to vector<8x16xf32>
    %143 = arith.mulf %142, %141 : vector<8x16xf32>
    %cst_54 = arith.constant 0.707106769 : f32
    %144 = vector.broadcast %cst_54 : f32 to vector<8x16xf32>
    %145 = arith.mulf %141, %144 : vector<8x16xf32>
    %146 = math.erf %145 : vector<8x16xf32>
    %cst_55 = arith.constant 1.000000e+00 : f32
    %147 = vector.broadcast %cst_55 : f32 to vector<8x16xf32>
    %148 = arith.addf %147, %146 : vector<8x16xf32>
    %149 = arith.mulf %143, %148 : vector<8x16xf32>
    %c0_56 = arith.constant 0 : index
    %c0_57 = arith.constant 0 : index
    %150 = vector.load %arg4[%c0_56, %c0_57] : memref<16x384xf32, #tpu.memory_space<vmem>>, vector<16x16xf32>
    %c0_58 = arith.constant 0 : index
    %c128_59 = arith.constant 128 : index
    %151 = vector.load %arg4[%c0_58, %c128_59] : memref<16x384xf32, #tpu.memory_space<vmem>>, vector<16x16xf32>
    %cst_60 = arith.constant dense<0.000000e+00> : vector<8x16xf32>
    %152 = tpu.matmul %149, %150, %cst_60 {dimension_numbers = #tpu.dot_dimension_numbers<[1], [0], [0], [1], [0, 0, 1, 1], [], []>} : vector<8x16xf32>, vector<16x16xf32>, vector<8x16xf32> -> vector<8x16xf32>
    %c15 = arith.constant 15 : index
    %c0_61 = arith.constant 0 : index
    %153 = vector.load %arg5[%c15, %c0_61] : memref<22x128xf32, #tpu.memory_space<vmem>>, vector<1x16xf32>
    %154 = vector.broadcast %153 : vector<1x16xf32> to vector<8x16xf32>
    %155 = arith.addf %152, %154 : vector<8x16xf32>
    %c16 = arith.constant 16 : index
    %c0_62 = arith.constant 0 : index
    %156 = vector.load %arg5[%c16, %c0_62] : memref<22x128xf32, #tpu.memory_space<vmem>>, vector<1x16xf32>
    %c17 = arith.constant 17 : index
    %c0_63 = arith.constant 0 : index
    %157 = vector.load %arg5[%c17, %c0_63] : memref<22x128xf32, #tpu.memory_space<vmem>>, vector<1x16xf32>
    %cst_64 = arith.constant dense<0.000000e+00> : vector<8xf32>
    %158 = vector.multi_reduction <add>, %155, %cst_64 [1] : vector<8x16xf32> to vector<8xf32>
    %159 = vector.shape_cast %158 : vector<8xf32> to vector<8x1xf32>
    %cst_65 = arith.constant 1.600000e+01 : f32
    %160 = vector.broadcast %cst_65 : f32 to vector<8x1xf32>
    %161 = arith.divf %159, %160 : vector<8x1xf32>
    %162 = arith.mulf %155, %155 : vector<8x16xf32>
    %cst_66 = arith.constant dense<0.000000e+00> : vector<8xf32>
    %163 = vector.multi_reduction <add>, %162, %cst_66 [1] : vector<8x16xf32> to vector<8xf32>
    %164 = vector.shape_cast %163 : vector<8xf32> to vector<8x1xf32>
    %cst_67 = arith.constant 1.600000e+01 : f32
    %165 = vector.broadcast %cst_67 : f32 to vector<8x1xf32>
    %166 = arith.divf %164, %165 : vector<8x1xf32>
    %167 = arith.mulf %161, %161 : vector<8x1xf32>
    %168 = arith.subf %166, %167 : vector<8x1xf32>
    %cst_68 = arith.constant 0.000000e+00 : f32
    %169 = vector.broadcast %cst_68 : f32 to vector<8x1xf32>
    %170 = arith.maximumf %168, %169 : vector<8x1xf32>
    %171 = vector.broadcast %161 : vector<8x1xf32> to vector<8x16xf32>
    %172 = arith.subf %155, %171 : vector<8x16xf32>
    %cst_69 = arith.constant 9.99999974E-6 : f32
    %173 = vector.broadcast %cst_69 : f32 to vector<8x1xf32>
    %174 = arith.addf %170, %173 : vector<8x1xf32>
    %175 = math.rsqrt %174 : vector<8x1xf32>
    %176 = vector.broadcast %175 : vector<8x1xf32> to vector<8x16xf32>
    %177 = arith.mulf %172, %176 : vector<8x16xf32>
    %178 = vector.broadcast %156 : vector<1x16xf32> to vector<8x16xf32>
    %179 = arith.mulf %177, %178 : vector<8x16xf32>
    %180 = vector.broadcast %157 : vector<1x16xf32> to vector<8x16xf32>
    %181 = arith.addf %179, %180 : vector<8x16xf32>
    %cst_70 = arith.constant 5.000000e-01 : f32
    %182 = vector.broadcast %cst_70 : f32 to vector<8x16xf32>
    %183 = arith.mulf %182, %181 : vector<8x16xf32>
    %cst_71 = arith.constant 0.707106769 : f32
    %184 = vector.broadcast %cst_71 : f32 to vector<8x16xf32>
    %185 = arith.mulf %181, %184 : vector<8x16xf32>
    %186 = math.erf %185 : vector<8x16xf32>
    %cst_72 = arith.constant 1.000000e+00 : f32
    %187 = vector.broadcast %cst_72 : f32 to vector<8x16xf32>
    %188 = arith.addf %187, %186 : vector<8x16xf32>
    %189 = arith.mulf %183, %188 : vector<8x16xf32>
    %cst_73 = arith.constant dense<0.000000e+00> : vector<8x16xf32>
    %190 = tpu.matmul %189, %151, %cst_73 {dimension_numbers = #tpu.dot_dimension_numbers<[1], [0], [0], [1], [0, 0, 1, 1], [], []>} : vector<8x16xf32>, vector<16x16xf32>, vector<8x16xf32> -> vector<8x16xf32>
    %c18 = arith.constant 18 : index
    %c0_74 = arith.constant 0 : index
    %191 = vector.load %arg5[%c18, %c0_74] : memref<22x128xf32, #tpu.memory_space<vmem>>, vector<1x16xf32>
    %192 = vector.broadcast %191 : vector<1x16xf32> to vector<8x16xf32>
    %193 = arith.addf %190, %192 : vector<8x16xf32>
    %c19 = arith.constant 19 : index
    %c0_75 = arith.constant 0 : index
    %194 = vector.load %arg5[%c19, %c0_75] : memref<22x128xf32, #tpu.memory_space<vmem>>, vector<1x16xf32>
    %c20 = arith.constant 20 : index
    %c0_76 = arith.constant 0 : index
    %195 = vector.load %arg5[%c20, %c0_76] : memref<22x128xf32, #tpu.memory_space<vmem>>, vector<1x16xf32>
    %cst_77 = arith.constant dense<0.000000e+00> : vector<8xf32>
    %196 = vector.multi_reduction <add>, %193, %cst_77 [1] : vector<8x16xf32> to vector<8xf32>
    %197 = vector.shape_cast %196 : vector<8xf32> to vector<8x1xf32>
    %cst_78 = arith.constant 1.600000e+01 : f32
    %198 = vector.broadcast %cst_78 : f32 to vector<8x1xf32>
    %199 = arith.divf %197, %198 : vector<8x1xf32>
    %200 = arith.mulf %193, %193 : vector<8x16xf32>
    %cst_79 = arith.constant dense<0.000000e+00> : vector<8xf32>
    %201 = vector.multi_reduction <add>, %200, %cst_79 [1] : vector<8x16xf32> to vector<8xf32>
    %202 = vector.shape_cast %201 : vector<8xf32> to vector<8x1xf32>
    %cst_80 = arith.constant 1.600000e+01 : f32
    %203 = vector.broadcast %cst_80 : f32 to vector<8x1xf32>
    %204 = arith.divf %202, %203 : vector<8x1xf32>
    %205 = arith.mulf %199, %199 : vector<8x1xf32>
    %206 = arith.subf %204, %205 : vector<8x1xf32>
    %cst_81 = arith.constant 0.000000e+00 : f32
    %207 = vector.broadcast %cst_81 : f32 to vector<8x1xf32>
    %208 = arith.maximumf %206, %207 : vector<8x1xf32>
    %209 = vector.broadcast %199 : vector<8x1xf32> to vector<8x16xf32>
    %210 = arith.subf %193, %209 : vector<8x16xf32>
    %cst_82 = arith.constant 9.99999974E-6 : f32
    %211 = vector.broadcast %cst_82 : f32 to vector<8x1xf32>
    %212 = arith.addf %208, %211 : vector<8x1xf32>
    %213 = math.rsqrt %212 : vector<8x1xf32>
    %214 = vector.broadcast %213 : vector<8x1xf32> to vector<8x16xf32>
    %215 = arith.mulf %210, %214 : vector<8x16xf32>
    %216 = vector.broadcast %194 : vector<1x16xf32> to vector<8x16xf32>
    %217 = arith.mulf %215, %216 : vector<8x16xf32>
    %218 = vector.broadcast %195 : vector<1x16xf32> to vector<8x16xf32>
    %219 = arith.addf %217, %218 : vector<8x16xf32>
    %220 = arith.addf %149, %219 : vector<8x16xf32>
    %cst_83 = arith.constant 0.000000e+00 : f32
    %221 = vector.broadcast %cst_83 : f32 to vector<8x112xf32>
    %222 = tpu.concatenate %220, %221 in 1 : vector<8x16xf32>, vector<8x112xf32> -> vector<8x128xf32>
    %c0_84 = arith.constant 0 : index
    %c0_85 = arith.constant 0 : index
    %223 = vector.load %arg7[%c0_84, %c0_85] : memref<8x128xf32, #tpu.memory_space<vmem>>, vector<8x128xf32>
    tpu.vector_store %arg7[%c0_84, %c0_85], %222 {strides = array<i32>} : memref<8x128xf32, #tpu.memory_space<vmem>>, vector<8x128xf32>,
    %c0_86 = arith.constant 0 : index
    %c256_87 = arith.constant 256 : index
    %224 = vector.load %arg4[%c0_86, %c256_87] : memref<16x384xf32, #tpu.memory_space<vmem>>, vector<16x32xf32>
    %cst_88 = arith.constant dense<0.000000e+00> : vector<8x32xf32>
    %225 = tpu.matmul %220, %224, %cst_88 {dimension_numbers = #tpu.dot_dimension_numbers<[1], [0], [0], [1], [0, 0, 1, 1], [], []>} : vector<8x16xf32>, vector<16x32xf32>, vector<8x32xf32> -> vector<8x32xf32>
    %c9 = arith.constant 9 : index
    %c0_89 = arith.constant 0 : index
    %226 = vector.load %arg5[%c9, %c0_89] : memref<22x128xf32, #tpu.memory_space<vmem>>, vector<1x32xf32>
    %227 = vector.broadcast %226 : vector<1x32xf32> to vector<8x32xf32>
    %228 = arith.addf %225, %227 : vector<8x32xf32>
    %c0_90 = arith.constant 0 : index
    %c384 = arith.constant 384 : index
    %229 = vector.load %arg3[%c0_90, %c384] : memref<32x640xf32, #tpu.memory_space<vmem>>, vector<32x32xf32>
    %cst_91 = arith.constant dense<0.000000e+00> : vector<8x32xf32>
    %230 = tpu.matmul %228, %229, %cst_91 {dimension_numbers = #tpu.dot_dimension_numbers<[1], [0], [0], [1], [0, 0, 1, 1], [], []>} : vector<8x32xf32>, vector<32x32xf32>, vector<8x32xf32> -> vector<8x32xf32>
    %231 = arith.mulf %228, %228 : vector<8x32xf32>
    %cst_92 = arith.constant dense<0.000000e+00> : vector<8x32xf32>
    %232 = tpu.matmul %231, %229, %cst_92 {dimension_numbers = #tpu.dot_dimension_numbers<[1], [0], [0], [1], [0, 0, 1, 1], [], []>} : vector<8x32xf32>, vector<32x32xf32>, vector<8x32xf32> -> vector<8x32xf32>
    %233 = arith.mulf %230, %230 : vector<8x32xf32>
    %234 = arith.subf %232, %233 : vector<8x32xf32>
    %cst_93 = arith.constant 0.000000e+00 : f32
    %235 = vector.broadcast %cst_93 : f32 to vector<8x32xf32>
    %236 = arith.maximumf %234, %235 : vector<8x32xf32>
    %237 = arith.subf %228, %230 : vector<8x32xf32>
    %cst_94 = arith.constant 9.99999974E-6 : f32
    %238 = vector.broadcast %cst_94 : f32 to vector<8x32xf32>
    %239 = arith.addf %236, %238 : vector<8x32xf32>
    %240 = math.rsqrt %239 : vector<8x32xf32>
    %241 = arith.mulf %237, %240 : vector<8x32xf32>
    %c10 = arith.constant 10 : index
    %c0_95 = arith.constant 0 : index
    %242 = vector.load %arg5[%c10, %c0_95] : memref<22x128xf32, #tpu.memory_space<vmem>>, vector<1x32xf32>
    %243 = vector.broadcast %242 : vector<1x32xf32> to vector<8x32xf32>
    %244 = arith.mulf %241, %243 : vector<8x32xf32>
    %c11 = arith.constant 11 : index
    %c0_96 = arith.constant 0 : index
    %245 = vector.load %arg5[%c11, %c0_96] : memref<22x128xf32, #tpu.memory_space<vmem>>, vector<1x32xf32>
    %246 = vector.broadcast %245 : vector<1x32xf32> to vector<8x32xf32>
    %247 = arith.addf %244, %246 : vector<8x32xf32>
    %cst_97 = arith.constant 5.000000e-01 : f32
    %248 = vector.broadcast %cst_97 : f32 to vector<8x32xf32>
    %249 = arith.mulf %248, %247 : vector<8x32xf32>
    %cst_98 = arith.constant 0.707106769 : f32
    %250 = vector.broadcast %cst_98 : f32 to vector<8x32xf32>
    %251 = arith.mulf %247, %250 : vector<8x32xf32>
    %252 = math.erf %251 : vector<8x32xf32>
    %cst_99 = arith.constant 1.000000e+00 : f32
    %253 = vector.broadcast %cst_99 : f32 to vector<8x32xf32>
    %254 = arith.addf %253, %252 : vector<8x32xf32>
    %255 = arith.mulf %249, %254 : vector<8x32xf32>
    %c0_100 = arith.constant 0 : index
    %c512 = arith.constant 512 : index
    %256 = vector.load %arg3[%c0_100, %c512] : memref<32x640xf32, #tpu.memory_space<vmem>>, vector<32x128xf32>
    %c21 = arith.constant 21 : index
    %c0_101 = arith.constant 0 : index
    %257 = vector.load %arg5[%c21, %c0_101] : memref<22x128xf32, #tpu.memory_space<vmem>>, vector<1x128xf32>
    %cst_102 = arith.constant dense<0.000000e+00> : vector<8x128xf32>
    %258 = tpu.matmul %255, %256, %cst_102 {dimension_numbers = #tpu.dot_dimension_numbers<[1], [0], [0], [1], [0, 0, 1, 1], [], []>} : vector<8x32xf32>, vector<32x128xf32>, vector<8x128xf32> -> vector<8x128xf32>
    %259 = vector.broadcast %257 : vector<1x128xf32> to vector<8x128xf32>
    %260 = arith.addf %258, %259 : vector<8x128xf32>
    %c0_103 = arith.constant 0 : index
    %c0_104 = arith.constant 0 : index
    %261 = vector.load %arg6[%c0_103, %c0_104] : memref<8x128xf32, #tpu.memory_space<vmem>>, vector<8x128xf32>
    tpu.vector_store %arg6[%c0_103, %c0_104], %260 {strides = array<i32>} : memref<8x128xf32, #tpu.memory_space<vmem>>, vector<8x128xf32>,
    return
  }
  func.func @transform_0(%arg0: i32) -> (i32, i32) {
    %c0_i32 = arith.constant 0 : i32
    %c0_i32_0 = arith.constant 0 : i32
    return %arg0, %c0_i32 : i32, i32
  }
  func.func @transform_1(%arg0: i32) -> (i32, i32) {
    %c0_i32 = arith.constant 0 : i32
    %c0_i32_0 = arith.constant 0 : i32
    %c0_i32_1 = arith.constant 0 : i32
    return %c0_i32, %c0_i32_0 : i32, i32
  }
  func.func @transform_2(%arg0: i32) -> (i32, i32) {
    %c0_i32 = arith.constant 0 : i32
    %c0_i32_0 = arith.constant 0 : i32
    %c0_i32_1 = arith.constant 0 : i32
    return %c0_i32, %c0_i32_0 : i32, i32
  }
  func.func @transform_3(%arg0: i32) -> (i32, i32) {
    %c0_i32 = arith.constant 0 : i32
    %c0_i32_0 = arith.constant 0 : i32
    %c0_i32_1 = arith.constant 0 : i32
    return %c0_i32, %c0_i32_0 : i32, i32
  }
  func.func @transform_4(%arg0: i32) -> (i32, i32) {
    %c0_i32 = arith.constant 0 : i32
    %c0_i32_0 = arith.constant 0 : i32
    %c0_i32_1 = arith.constant 0 : i32
    return %c0_i32, %c0_i32_0 : i32, i32
  }
  func.func @transform_5(%arg0: i32) -> (i32, i32) {
    %c0_i32 = arith.constant 0 : i32
    %c0_i32_0 = arith.constant 0 : i32
    return %arg0, %c0_i32 : i32, i32
  }
  func.func @transform_6(%arg0: i32) -> (i32, i32) {
    %c0_i32 = arith.constant 0 : i32
    %c0_i32_0 = arith.constant 0 : i32
    return %arg0, %c0_i32 : i32, i32
  }
}

</mosaic_0001>

<llo_original>
// kernel: tpu_custom_call.1
$region0: #{tpu_custom_call.1}
  #allocation0 [shape = 'u32[]', space=smem, size = 0x4, offset = 0x4, fixed_abs, tag = 'smem constant byte address 0x4 - core index']
  #allocation1 [shape = 'u32[72,128]{1,0:T(1,128)}', space=vmem, size = 0x9000, scoped, tag = 'internal scratch']
  %s0 = inlined_call_operand.hbm [shape: f32[8,16], index: 0, kind: input, shape index: {}]
  %s1 = inlined_call_operand.hbm [shape: f32[16,32], index: 1, kind: input, shape index: {}]
  %s2 = inlined_call_operand.hbm [shape: f32[32,640], index: 2, kind: input, shape index: {}]
  %s3 = inlined_call_operand.hbm [shape: f32[16,384], index: 3, kind: input, shape index: {}]
  %s4 = inlined_call_operand.hbm [shape: f32[22,128], index: 4, kind: input, shape index: {}]
  %s5 = inlined_call_operand.hbm [shape: f32[8,128], index: 5, kind: output, shape index: {0}]
  %s6 = inlined_call_operand.hbm [shape: f32[8,128], index: 6, kind: output, shape index: {1}]
  %7 = xla_tuple %s5, %s6
  %s8 = sld [smem:[#allocation0]]
  $region58: #{tpu_custom_call.1} parent=0
    _
  %s10 = ssub.s32 1, %s8
  %s11 = scalar_select 0, %s10, %s8
  $region1: #{tpu_custom_call.1} parent=0
    #allocation2 [shape = 'u8[4096]{0}', space=vmem, size = 0x1000, scoped, tag = 'input window, operand 0, single buffered']
    #allocation3 [shape = 's32[1]{0}', space=sflag, size = 0x4, scoped, tag = 'scoped memory for tpu_custom_call.1']
    #allocation4 [shape = 's32[1]{0}', space=sflag, size = 0x4, scoped, tag = 'scoped memory for tpu_custom_call.1']
    #allocation5 [shape = 'u8[8192]{0}', space=vmem, size = 0x2000, scoped, tag = 'input window, operand 1, single buffered']
    #allocation6 [shape = 's32[1]{0}', space=sflag, size = 0x4, scoped, tag = 'scoped memory for tpu_custom_call.1']
    #allocation7 [shape = 'u8[81920]{0}', space=vmem, size = 0x14000, scoped, tag = 'input window, operand 2, single buffered']
    #allocation8 [shape = 'u8[24576]{0}', space=vmem, size = 0x6000, scoped, tag = 'input window, operand 3, single buffered']
    #allocation9 [shape = 's32[1]{0}', space=sflag, size = 0x4, scoped, tag = 'scoped memory for tpu_custom_call.1']
    #allocation10 [shape = 'u8[12288]{0}', space=vmem, size = 0x3000, scoped, tag = 'input window, operand 4, single buffered']
    #allocation11 [shape = 'u8[4096]{0}', space=vmem, size = 0x1000, scoped, tag = 'output window, operand 0, single buffered']
    #allocation12 [shape = 'u8[4096]{0}', space=vmem, size = 0x1000, scoped, tag = 'output window, operand 1, single buffered']
    #allocation13 [shape = 's32[1]{0}', space=sflag, size = 0x4, scoped, tag = 'scoped memory for tpu_custom_call.1']
    %12 = vsyncpa [#allocation3], 0
    %13 = vsyncpa [#allocation6], 0
    %14 = vsyncpa [#allocation9], 0
    %15 = vsyncpa [#allocation4], 0
    %16 = vsyncpa [#allocation13], 0
    // Predicated region
    $region2: #{tpu_custom_call.1} parent=1 // pred_check
      _
    $region3: #{tpu_custom_call.1} parent=1 // pred_check_branch
      %18 = sbr.rel (0) target = $region5
    $region4: #{tpu_custom_call.1} parent=1 // pred_region
      %20 = vsyncadd [#allocation3], 0
      %s22 = sshll.u32 %s0, 4
      %s23 = int_to_ptr.hbm [resolvable:$true] %s22
      %s24 = sshll.u32 [#allocation2], 4
      %s25 = int_to_ptr.vmem [resolvable:$true] %s24
      %27 = dma.hbm_to_vmem [thread:$0]  %s23, 128, %s25, [#allocation3]
    $region5: #{tpu_custom_call.1} parent=1 // pred_fallthru
      _
    // Predicated region
    $region6: #{tpu_custom_call.1} parent=1 // pred_check
      _
    $region7: #{tpu_custom_call.1} parent=1 // pred_check_branch
      %29 = sbr.rel (0) target = $region9
    $region8: #{tpu_custom_call.1} parent=1 // pred_region
      %31 = vsyncadd [#allocation6], 0
      %s32 = sshll.u32 %s1, 4
      %s33 = int_to_ptr.hbm [resolvable:$true] %s32
      %s34 = sshll.u32 [#allocation5], 4
      %s35 = int_to_ptr.vmem [resolvable:$true] %s34
      %40 = dma.hbm_to_vmem [thread:$0]  %s33, 256, %s35, [#allocation6], 128, 128, 8
    $region9: #{tpu_custom_call.1} parent=1 // pred_fallthru
      _
    // Predicated region
    $region10: #{tpu_custom_call.1} parent=1 // pred_check
      _
    $region11: #{tpu_custom_call.1} parent=1 // pred_check_branch
      %42 = sbr.rel (0) target = $region13
    $region12: #{tpu_custom_call.1} parent=1 // pred_region
      %44 = vsyncadd [#allocation6], 0
      %s45 = sshll.u32 %s2, 4
      %s46 = int_to_ptr.hbm [resolvable:$true] %s45
      %s47 = sshll.u32 [#allocation7], 4
      %s48 = int_to_ptr.vmem [resolvable:$true] %s47
      %53 = dma.hbm_to_vmem [thread:$0]  %s46, 2560, %s48, [#allocation6], 640, 640, 40
    $region13: #{tpu_custom_call.1} parent=1 // pred_fallthru
      _
    // Predicated region
    $region14: #{tpu_custom_call.1} parent=1 // pred_check
      _
    $region15: #{tpu_custom_call.1} parent=1 // pred_check_branch
      %55 = sbr.rel (0) target = $region17
    $region16: #{tpu_custom_call.1} parent=1 // pred_region
      %57 = vsyncadd [#allocation9], 0
      %s58 = sshll.u32 %s3, 4
      %s59 = int_to_ptr.hbm [resolvable:$true] %s58
      %s60 = sshll.u32 [#allocation8], 4
      %s61 = int_to_ptr.vmem [resolvable:$true] %s60
      %66 = dma.hbm_to_vmem [thread:$0]  %s59, 768, %s61, [#allocation9], 384, 384, 24
    $region17: #{tpu_custom_call.1} parent=1 // pred_fallthru
      _
    // Predicated region
    $region18: #{tpu_custom_call.1} parent=1 // pred_check
      _
    $region19: #{tpu_custom_call.1} parent=1 // pred_check_branch
      %68 = sbr.rel (0) target = $region21
    $region20: #{tpu_custom_call.1} parent=1 // pred_region
      %70 = vsyncadd [#allocation9], 0
      %s71 = sshll.u32 %s4, 4
      %s72 = int_to_ptr.hbm [resolvable:$true] %s71
      %s73 = sshll.u32 [#allocation10], 4
      %s74 = int_to_ptr.vmem [resolvable:$true] %s73
      %79 = dma.hbm_to_vmem [thread:$0]  %s72, 384, %s74, [#allocation9], 128, 128, 8
    $region21: #{tpu_custom_call.1} parent=1 // pred_fallthru
      _
    // Predicated region
    $region22: #{tpu_custom_call.1} parent=1 // pred_check
      _
    $region23: #{tpu_custom_call.1} parent=1 // pred_check_branch
      %81 = sbr.rel (0) target = $region25
    $region24: #{tpu_custom_call.1} parent=1 // pred_region
      %83 = dma.done [#allocation3], 128
    $region25: #{tpu_custom_call.1} parent=1 // pred_fallthru
      _
    // Predicated region
    $region26: #{tpu_custom_call.1} parent=1 // pred_check
      _
    $region27: #{tpu_custom_call.1} parent=1 // pred_check_branch
      %85 = sbr.rel (0) target = $region29
    $region28: #{tpu_custom_call.1} parent=1 // pred_region
      %87 = dma.done [#allocation6], 256
    $region29: #{tpu_custom_call.1} parent=1 // pred_fallthru
      _
    // Predicated region
    $region30: #{tpu_custom_call.1} parent=1 // pred_check
      _
    $region31: #{tpu_custom_call.1} parent=1 // pred_check_branch
      %89 = sbr.rel (0) target = $region33
    $region32: #{tpu_custom_call.1} parent=1 // pred_region
      %91 = dma.done [#allocation6], 2560
    $region33: #{tpu_custom_call.1} parent=1 // pred_fallthru
      _
    // Predicated region
    $region34: #{tpu_custom_call.1} parent=1 // pred_check
      _
    $region35: #{tpu_custom_call.1} parent=1 // pred_check_branch
      %93 = sbr.rel (0) target = $region37
    $region36: #{tpu_custom_call.1} parent=1 // pred_region
      %95 = dma.done [#allocation9], 768
    $region37: #{tpu_custom_call.1} parent=1 // pred_fallthru
      _
    // Predicated region
    $region38: #{tpu_custom_call.1} parent=1 // pred_check
      _
    $region39: #{tpu_custom_call.1} parent=1 // pred_check_branch
      %97 = sbr.rel (0) target = $region41
    $region40: #{tpu_custom_call.1} parent=1 // pred_region
      %99 = dma.done [#allocation9], 384
    $region41: #{tpu_custom_call.1} parent=1 // pred_fallthru
      _
    %v100 = vld [vmem:[#allocation2] sm:$0xff]
    %v101 = vld [vmem:[#allocation5] sm:$0xff]
    %v102 = vld [vmem:[#allocation5 + $0x8] sm:$0xff]
    %v103 = vld [vmem:[#allocation10] sm:$0x1]
    %v104 = vperm.slane %v103, 0
    %vm105 = vcmask 130048
    %v107 = vsel %vm105, %v100, 0
    %109 = vmatpush.msra.mxu0 0.0
    %110 = vmatpush.msra.mxu0 0.0
    %111 = vmatpush.msra.mxu0 0.0
    %112 = vmatpush.msra.mxu0 0.0
    %113 = vmatpush.msra.mxu0 0.0
    %114 = vmatpush.msra.mxu0 0.0
    %115 = vmatpush.msra.mxu0 0.0
    %116 = vmatpush.msra.mxu0 0.0
    %117 = vmatpush.msra.mxu0 0.0
    %118 = vmatpush.msra.mxu0 0.0
    %119 = vmatpush.msra.mxu0 0.0
    %120 = vmatpush.msra.mxu0 0.0
    %121 = vmatpush.msra.mxu0 0.0
    %122 = vmatpush.msra.mxu0 0.0
    %123 = vmatpush.msra.mxu0 %v102
    %124 = vmatpush.msra.mxu0 %v101
    %125 = vmatmul.f32.gmra.mxu0 %v107
    %v126 = vpop.f32.mrf.mxu0
    %v127 = vadd.f32 %v104, %v126
    %128 = vdwg.mxu0
    %v129 = vld [vmem:[#allocation10 + $0x1] sm:$0x1]
    %v130 = vld [vmem:[#allocation10 + $0x2] sm:$0x1]
    %vm131 = vcmask 261120
    %v132 = vsel %vm131, %v127, 0.0
    %133 = vadd.xlane.f32.xlu0 %v132
    %v134 = vpop.xlane.xlu0 %133
    %v135 = vrcp.pop 32.0
    %v136 = vmul.f32 32.0, %v135
    %v137 = vsub.f32 1.0, %v136
    %v138 = vmul.f32 %v135, %v137
    %v139 = vadd.f32 %v135, %v138
    %vm140 = vweird.f32 %v135
    %v141 = vsel %vm140, %v135, %v139
    %v142 = vmul.f32 %v134, %v141
    %v143 = vmul.f32 %v127, %v127
    %v144 = vsel %vm131, %v143, 0.0
    %145 = vadd.xlane.f32.xlu0 %v144
    %v146 = vpop.xlane.xlu0 %145
    %v147 = vmul.f32 %v146, %v141
    %v148 = vmul.f32 %v142, %v142
    %v149 = vsub.f32 %v147, %v148
    %v150 = vmax.f32 %v149, 0.0
    %v151 = vsub.f32 %v127, %v142
    %v152 = vadd.f32 %v150, 1e-05
    %v153 = vrsqrt.pop %v152
    %v154 = vmul.f32 %v153, %v152
    %v155 = vmul.f32 %v154, %v153
    %v156 = vmul.f32 0.5, %v155
    %v157 = vsub.f32 1.5, %v156
    %v158 = vmul.f32 %v153, %v157
    %vm159 = vweird.f32 %v152
    %vm160 = vweird.f32 %v153
    %vm161 = vmor %vm159, %vm160
    %v162 = vsel %vm161, %v153, %v158
    %v163 = vmul.f32 %v151, %v162
    %v164 = vperm.slane %v129, 0
    %v165 = vmul.f32 %v163, %v164
    %v166 = vperm.slane %v130, 0
    %v167 = vadd.f32 %v165, %v166
    %v168 = vmul.f32 %v167, 0.5
    %v169 = vmul.f32 %v167, 0.70710677
    %v170 = vmul.f32 %v169, %v169
    %v171 = vmin.f32 16.0, %v170
    %v172 = vmul.f32 %v171, 2.1237322e-06
    %v173 = vadd.f32 %v172, 0.00028619796
    %v174 = vmul.f32 %v171, %v173
    %v175 = vadd.f32 %v174, 0.0036580483
    %v176 = vmul.f32 %v171, %v175
    %v177 = vadd.f32 %v176, 0.05243302
    %v178 = vmul.f32 %v171, %v177
    %v179 = vadd.f32 %v178, 0.18741608
    %v180 = vmul.f32 %v171, %v179
    %v181 = vadd.f32 %v180, 1.1283791
    %v182 = vmul.f32 %v169, %v181
    %v183 = vmul.f32 %v171, 3.8918573e-05
    %v184 = vadd.f32 %v183, 0.001143296
    %v185 = vmul.f32 %v171, %v184
    %v186 = vadd.f32 %v185, 0.014752088
    %v187 = vmul.f32 %v171, %v186
    %v188 = vadd.f32 %v187, 0.112945676
    %v189 = vmul.f32 %v171, %v188
    %v190 = vadd.f32 %v189, 0.4994258
    %v191 = vmul.f32 %v171, %v190
    %v192 = vadd.f32 %v191, 1.0
    %v193 = vrcp.pop %v192
    %v194 = vmul.f32 %v192, %v193
    %v195 = vsub.f32 1.0, %v194
    %v196 = vmul.f32 %v193, %v195
    %v197 = vadd.f32 %v193, %v196
    %vm198 = vweird.f32 %v192
    %vm199 = vweird.f32 %v193
    %vm200 = vmor %vm198, %vm199
    %v201 = vsel %vm200, %v193, %v197
    %v202 = vand.u32 2147483647, %v192
    %vm203 = vcmp.eq.f32.partialorder %v202, 8.507059e+37
    %v204 = vand.u32 %v192, 2147483648
    %v205 = vor.u32 1.1754944e-38, %v204
    %v206 = vsel %vm203, %v205, %v201
    %v207 = vmul.f32 %v182, %v206
    %v208 = vmin.f32 %v207, 1.0
    %v209 = vmax.f32 %v208, -1.0
    %v210 = vadd.f32 %v209, 1.0
    %v211 = vmul.f32 %v168, %v210
    %v212 = vld [vmem:[#allocation7] sm:$0xff]
    %v213 = vld [vmem:[#allocation7 + $0x28] sm:$0xff]
    %v214 = vld [vmem:[#allocation7 + $0x50] sm:$0xff]
    %v215 = vld [vmem:[#allocation7 + $0x78] sm:$0xff]
    %v216 = vld [vmem:[#allocation7 + $0x8] sm:$0xff]
    %v217 = vld [vmem:[#allocation7 + $0x30] sm:$0xff]
    %v218 = vld [vmem:[#allocation7 + $0x58] sm:$0xff]
    %v219 = vld [vmem:[#allocation7 + $0x80] sm:$0xff]
    %v220 = vld [vmem:[#allocation10 + $0x3] sm:$0x1]
    %v221 = vperm.slane %v220, 0
    %v223 = vsel %vm131, %v211, 0
    %225 = vmatpush.msra.mxu0 0.0
    %226 = vmatpush.msra.mxu0 0.0
    %227 = vmatpush.msra.mxu0 0.0
    %228 = vmatpush.msra.mxu0 0.0
    %229 = vmatpush.msra.mxu0 0.0
    %230 = vmatpush.msra.mxu0 0.0
    %231 = vmatpush.msra.mxu0 0.0
    %232 = vmatpush.msra.mxu0 0.0
    %233 = vmatpush.msra.mxu0 0.0
    %234 = vmatpush.msra.mxu0 0.0
    %235 = vmatpush.msra.mxu0 0.0
    %236 = vmatpush.msra.mxu0 0.0
    %237 = vmatpush.msra.mxu0 %v215
    %238 = vmatpush.msra.mxu0 %v214
    %239 = vmatpush.msra.mxu0 %v213
    %240 = vmatpush.msra.mxu0 %v212
    %241 = vmatmul.f32.gmra.mxu0 %v223
    %v242 = vpop.f32.mrf.mxu0
    %v243 = vadd.f32 %v221, %v242
    %244 = vdwg.mxu0
    %v245 = vld [vmem:[#allocation10 + $0x4] sm:$0x1]
    %v246 = vld [vmem:[#allocation10 + $0x5] sm:$0x1]
    %v247 = vsel %vm131, %v243, 0.0
    %248 = vadd.xlane.f32.xlu0 %v247
    %v249 = vpop.xlane.xlu0 %248
    %v250 = vmul.f32 %v249, %v141
    %v251 = vmul.f32 %v243, %v243
    %v252 = vsel %vm131, %v251, 0.0
    %253 = vadd.xlane.f32.xlu0 %v252
    %v254 = vpop.xlane.xlu0 %253
    %v255 = vmul.f32 %v254, %v141
    %v256 = vmul.f32 %v250, %v250
    %v257 = vsub.f32 %v255, %v256
    %v258 = vmax.f32 %v257, 0.0
    %v259 = vsub.f32 %v243, %v250
    %v260 = vadd.f32 %v258, 1e-05
    %v261 = vrsqrt.pop %v260
    %v262 = vmul.f32 %v261, %v260
    %v263 = vmul.f32 %v262, %v261
    %v264 = vmul.f32 0.5, %v263
    %v265 = vsub.f32 1.5, %v264
    %v266 = vmul.f32 %v261, %v265
    %vm267 = vweird.f32 %v260
    %vm268 = vweird.f32 %v261
    %vm269 = vmor %vm267, %vm268
    %v270 = vsel %vm269, %v261, %v266
    %v271 = vmul.f32 %v259, %v270
    %v272 = vperm.slane %v245, 0
    %v273 = vmul.f32 %v271, %v272
    %v274 = vperm.slane %v246, 0
    %v275 = vadd.f32 %v273, %v274
    %v276 = vmul.f32 %v275, 0.5
    %v277 = vmul.f32 %v275, 0.70710677
    %v278 = vmul.f32 %v277, %v277
    %v279 = vmin.f32 16.0, %v278
    %v280 = vmul.f32 %v279, 2.1237322e-06
    %v281 = vadd.f32 %v280, 0.00028619796
    %v282 = vmul.f32 %v279, %v281
    %v283 = vadd.f32 %v282, 0.0036580483
    %v284 = vmul.f32 %v279, %v283
    %v285 = vadd.f32 %v284, 0.05243302
    %v286 = vmul.f32 %v279, %v285
    %v287 = vadd.f32 %v286, 0.18741608
    %v288 = vmul.f32 %v279, %v287
    %v289 = vadd.f32 %v288, 1.1283791
    %v290 = vmul.f32 %v277, %v289
    %v291 = vmul.f32 %v279, 3.8918573e-05
    %v292 = vadd.f32 %v291, 0.001143296
    %v293 = vmul.f32 %v279, %v292
    %v294 = vadd.f32 %v293, 0.014752088
    %v295 = vmul.f32 %v279, %v294
    %v296 = vadd.f32 %v295, 0.112945676
    %v297 = vmul.f32 %v279, %v296
    %v298 = vadd.f32 %v297, 0.4994258
    %v299 = vmul.f32 %v279, %v298
    %v300 = vadd.f32 %v299, 1.0
    %v301 = vrcp.pop %v300
    %v302 = vmul.f32 %v300, %v301
    %v303 = vsub.f32 1.0, %v302
    %v304 = vmul.f32 %v301, %v303
    %v305 = vadd.f32 %v301, %v304
    %vm306 = vweird.f32 %v300
    %vm307 = vweird.f32 %v301
    %vm308 = vmor %vm306, %vm307
    %v309 = vsel %vm308, %v301, %v305
    %v310 = vand.u32 2147483647, %v300
    %vm311 = vcmp.eq.f32.partialorder %v310, 8.507059e+37
    %v312 = vand.u32 %v300, 2147483648
    %v313 = vor.u32 1.1754944e-38, %v312
    %v314 = vsel %vm311, %v313, %v309
    %v315 = vmul.f32 %v290, %v314
    %v316 = vmin.f32 %v315, 1.0
    %v317 = vmax.f32 %v316, -1.0
    %v318 = vadd.f32 %v317, 1.0
    %v319 = vmul.f32 %v276, %v318
    %v320 = vld [vmem:[#allocation10 + $0x6] sm:$0x1]
    %v321 = vperm.slane %v320, 0
    %v323 = vsel %vm131, %v319, 0
    %325 = vmatpush.msra.mxu0 0.0
    %326 = vmatpush.msra.mxu0 0.0
    %327 = vmatpush.msra.mxu0 0.0
    %328 = vmatpush.msra.mxu0 0.0
    %329 = vmatpush.msra.mxu0 0.0
    %330 = vmatpush.msra.mxu0 0.0
    %331 = vmatpush.msra.mxu0 0.0
    %332 = vmatpush.msra.mxu0 0.0
    %333 = vmatpush.msra.mxu0 0.0
    %334 = vmatpush.msra.mxu0 0.0
    %335 = vmatpush.msra.mxu0 0.0
    %336 = vmatpush.msra.mxu0 0.0
    %337 = vmatpush.msra.mxu0 %v219
    %338 = vmatpush.msra.mxu0 %v218
    %339 = vmatpush.msra.mxu0 %v217
    %340 = vmatpush.msra.mxu0 %v216
    %341 = vmatmul.f32.gmra.mxu0 %v323
    %v342 = vpop.f32.mrf.mxu0
    %v343 = vadd.f32 %v321, %v342
    %344 = vdwg.mxu0
    %v345 = vld [vmem:[#allocation10 + $0x7] sm:$0x1]
    %v346 = vld [vmem:[#allocation10 + $0x8] sm:$0x1]
    %v347 = vsel %vm131, %v343, 0.0
    %348 = vadd.xlane.f32.xlu0 %v347
    %v349 = vpop.xlane.xlu0 %348
    %v350 = vmul.f32 %v349, %v141
    %v351 = vmul.f32 %v343, %v343
    %v352 = vsel %vm131, %v351, 0.0
    %353 = vadd.xlane.f32.xlu0 %v352
    %v354 = vpop.xlane.xlu0 %353
    %v355 = vmul.f32 %v354, %v141
    %v356 = vmul.f32 %v350, %v350
    %v357 = vsub.f32 %v355, %v356
    %v358 = vmax.f32 %v357, 0.0
    %v359 = vsub.f32 %v343, %v350
    %v360 = vadd.f32 %v358, 1e-05
    %v361 = vrsqrt.pop %v360
    %v362 = vmul.f32 %v361, %v360
    %v363 = vmul.f32 %v362, %v361
    %v364 = vmul.f32 0.5, %v363
    %v365 = vsub.f32 1.5, %v364
    %v366 = vmul.f32 %v361, %v365
    %vm367 = vweird.f32 %v360
    %vm368 = vweird.f32 %v361
    %vm369 = vmor %vm367, %vm368
    %v370 = vsel %vm369, %v361, %v366
    %v371 = vmul.f32 %v359, %v370
    %v372 = vperm.slane %v345, 0
    %v373 = vmul.f32 %v371, %v372
    %v374 = vperm.slane %v346, 0
    %v375 = vadd.f32 %v373, %v374
    %v376 = vadd.f32 %v211, %v375
    %v377 = vld [vmem:[#allocation7 + $0x10] sm:$0xff]
    %v378 = vld [vmem:[#allocation7 + $0x38] sm:$0xff]
    %v379 = vld [vmem:[#allocation7 + $0x60] sm:$0xff]
    %v380 = vld [vmem:[#allocation7 + $0x88] sm:$0xff]
    %v381 = vld [vmem:[#allocation10 + $0xc] sm:$0x1]
    %v382 = vperm.slane %v381, 0
    %v384 = vsel %vm131, %v376, 0
    %386 = vmatpush.msra.mxu0 0.0
    %387 = vmatpush.msra.mxu0 0.0
    %388 = vmatpush.msra.mxu0 0.0
    %389 = vmatpush.msra.mxu0 0.0
    %390 = vmatpush.msra.mxu0 0.0
    %391 = vmatpush.msra.mxu0 0.0
    %392 = vmatpush.msra.mxu0 0.0
    %393 = vmatpush.msra.mxu0 0.0
    %394 = vmatpush.msra.mxu0 0.0
    %395 = vmatpush.msra.mxu0 0.0
    %396 = vmatpush.msra.mxu0 0.0
    %397 = vmatpush.msra.mxu0 0.0
    %398 = vmatpush.msra.mxu0 %v380
    %399 = vmatpush.msra.mxu0 %v379
    %400 = vmatpush.msra.mxu0 %v378
    %401 = vmatpush.msra.mxu0 %v377
    %402 = vmatmul.f32.gmra.mxu0 %v384
    %v403 = vpop.f32.mrf.mxu0
    %v404 = vadd.f32 %v382, %v403
    %405 = vdwg.mxu0
    %v406 = vld [vmem:[#allocation10 + $0xd] sm:$0x1]
    %v407 = vld [vmem:[#allocation10 + $0xe] sm:$0x1]
    %v408 = vsel %vm105, %v404, 0.0
    %409 = vadd.xlane.f32.xlu0 %v408
    %v410 = vpop.xlane.xlu0 %409
    %v411 = vrcp.pop 16.0
    %v412 = vmul.f32 16.0, %v411
    %v413 = vsub.f32 1.0, %v412
    %v414 = vmul.f32 %v411, %v413
    %v415 = vadd.f32 %v411, %v414
    %vm416 = vweird.f32 %v411
    %v417 = vsel %vm416, %v411, %v415
    %v418 = vmul.f32 %v410, %v417
    %v419 = vmul.f32 %v404, %v404
    %v420 = vsel %vm105, %v419, 0.0
    %421 = vadd.xlane.f32.xlu0 %v420
    %v422 = vpop.xlane.xlu0 %421
    %v423 = vmul.f32 %v422, %v417
    %v424 = vmul.f32 %v418, %v418
    %v425 = vsub.f32 %v423, %v424
    %v426 = vmax.f32 %v425, 0.0
    %v427 = vsub.f32 %v404, %v418
    %v428 = vadd.f32 %v426, 1e-05
    %v429 = vrsqrt.pop %v428
    %v430 = vmul.f32 %v429, %v428
    %v431 = vmul.f32 %v430, %v429
    %v432 = vmul.f32 0.5, %v431
    %v433 = vsub.f32 1.5, %v432
    %v434 = vmul.f32 %v429, %v433
    %vm435 = vweird.f32 %v428
    %vm436 = vweird.f32 %v429
    %vm437 = vmor %vm435, %vm436
    %v438 = vsel %vm437, %v429, %v434
    %v439 = vmul.f32 %v427, %v438
    %v440 = vperm.slane %v406, 0
    %v441 = vmul.f32 %v439, %v440
    %v442 = vperm.slane %v407, 0
    %v443 = vadd.f32 %v441, %v442
    %v444 = vmul.f32 %v443, 0.5
    %v445 = vmul.f32 %v443, 0.70710677
    %v446 = vmul.f32 %v445, %v445
    %v447 = vmin.f32 16.0, %v446
    %v448 = vmul.f32 %v447, 2.1237322e-06
    %v449 = vadd.f32 %v448, 0.00028619796
    %v450 = vmul.f32 %v447, %v449
    %v451 = vadd.f32 %v450, 0.0036580483
    %v452 = vmul.f32 %v447, %v451
    %v453 = vadd.f32 %v452, 0.05243302
    %v454 = vmul.f32 %v447, %v453
    %v455 = vadd.f32 %v454, 0.18741608
    %v456 = vmul.f32 %v447, %v455
    %v457 = vadd.f32 %v456, 1.1283791
    %v458 = vmul.f32 %v445, %v457
    %v459 = vmul.f32 %v447, 3.8918573e-05
    %v460 = vadd.f32 %v459, 0.001143296
    %v461 = vmul.f32 %v447, %v460
    %v462 = vadd.f32 %v461, 0.014752088
    %v463 = vmul.f32 %v447, %v462
    %v464 = vadd.f32 %v463, 0.112945676
    %v465 = vmul.f32 %v447, %v464
    %v466 = vadd.f32 %v465, 0.4994258
    %v467 = vmul.f32 %v447, %v466
    %v468 = vadd.f32 %v467, 1.0
    %v469 = vrcp.pop %v468
    %v470 = vmul.f32 %v468, %v469
    %v471 = vsub.f32 1.0, %v470
    %v472 = vmul.f32 %v469, %v471
    %v473 = vadd.f32 %v469, %v472
    %vm474 = vweird.f32 %v468
    %vm475 = vweird.f32 %v469
    %vm476 = vmor %vm474, %vm475
    %v477 = vsel %vm476, %v469, %v473
    %v478 = vand.u32 2147483647, %v468
    %vm479 = vcmp.eq.f32.partialorder %v478, 8.507059e+37
    %v480 = vand.u32 %v468, 2147483648
    %v481 = vor.u32 1.1754944e-38, %v480
    %v482 = vsel %vm479, %v481, %v477
    %v483 = vmul.f32 %v458, %v482
    %v484 = vmin.f32 %v483, 1.0
    %v485 = vmax.f32 %v484, -1.0
    %v486 = vadd.f32 %v485, 1.0
    %v487 = vmul.f32 %v444, %v486
    %v488 = vld [vmem:[#allocation8] sm:$0xff]
    %v489 = vld [vmem:[#allocation8 + $0x18] sm:$0xff]
    %v490 = vld [vmem:[#allocation8 + $0x8] sm:$0xff]
    %v491 = vld [vmem:[#allocation8 + $0x20] sm:$0xff]
    %v492 = vld [vmem:[#allocation10 + $0xf] sm:$0x1]
    %v493 = vperm.slane %v492, 0
    %v495 = vsel %vm105, %v487, 0
    %497 = vmatpush.msra.mxu0 0.0
    %498 = vmatpush.msra.mxu0 0.0
    %499 = vmatpush.msra.mxu0 0.0
    %500 = vmatpush.msra.mxu0 0.0
    %501 = vmatpush.msra.mxu0 0.0
    %502 = vmatpush.msra.mxu0 0.0
    %503 = vmatpush.msra.mxu0 0.0
    %504 = vmatpush.msra.mxu0 0.0
    %505 = vmatpush.msra.mxu0 0.0
    %506 = vmatpush.msra.mxu0 0.0
    %507 = vmatpush.msra.mxu0 0.0
    %508 = vmatpush.msra.mxu0 0.0
    %509 = vmatpush.msra.mxu0 0.0
    %510 = vmatpush.msra.mxu0 0.0
    %511 = vmatpush.msra.mxu0 %v489
    %512 = vmatpush.msra.mxu0 %v488
    %513 = vmatmul.f32.gmra.mxu0 %v495
    %v514 = vpop.f32.mrf.mxu0
    %v515 = vadd.f32 %v493, %v514
    %516 = vdwg.mxu0
    %v517 = vld [vmem:[#allocation10 + $0x10] sm:$0x1]
    %v518 = vld [vmem:[#allocation10 + $0x11] sm:$0x1]
    %v519 = vsel %vm105, %v515, 0.0
    %520 = vadd.xlane.f32.xlu0 %v519
    %v521 = vpop.xlane.xlu0 %520
    %v522 = vmul.f32 %v521, %v417
    %v523 = vmul.f32 %v515, %v515
    %v524 = vsel %vm105, %v523, 0.0
    %525 = vadd.xlane.f32.xlu0 %v524
    %v526 = vpop.xlane.xlu0 %525
    %v527 = vmul.f32 %v526, %v417
    %v528 = vmul.f32 %v522, %v522
    %v529 = vsub.f32 %v527, %v528
    %v530 = vmax.f32 %v529, 0.0
    %v531 = vsub.f32 %v515, %v522
    %v532 = vadd.f32 %v530, 1e-05
    %v533 = vrsqrt.pop %v532
    %v534 = vmul.f32 %v533, %v532
    %v535 = vmul.f32 %v534, %v533
    %v536 = vmul.f32 0.5, %v535
    %v537 = vsub.f32 1.5, %v536
    %v538 = vmul.f32 %v533, %v537
    %vm539 = vweird.f32 %v532
    %vm540 = vweird.f32 %v533
    %vm541 = vmor %vm539, %vm540
    %v542 = vsel %vm541, %v533, %v538
    %v543 = vmul.f32 %v531, %v542
    %v544 = vperm.slane %v517, 0
    %v545 = vmul.f32 %v543, %v544
    %v546 = vperm.slane %v518, 0
    %v547 = vadd.f32 %v545, %v546
    %v548 = vmul.f32 %v547, 0.5
    %v549 = vmul.f32 %v547, 0.70710677
    %v550 = vmul.f32 %v549, %v549
    %v551 = vmin.f32 16.0, %v550
    %v552 = vmul.f32 %v551, 2.1237322e-06
    %v553 = vadd.f32 %v552, 0.00028619796
    %v554 = vmul.f32 %v551, %v553
    %v555 = vadd.f32 %v554, 0.0036580483
    %v556 = vmul.f32 %v551, %v555
    %v557 = vadd.f32 %v556, 0.05243302
    %v558 = vmul.f32 %v551, %v557
    %v559 = vadd.f32 %v558, 0.18741608
    %v560 = vmul.f32 %v551, %v559
    %v561 = vadd.f32 %v560, 1.1283791
    %v562 = vmul.f32 %v549, %v561
    %v563 = vmul.f32 %v551, 3.8918573e-05
    %v564 = vadd.f32 %v563, 0.001143296
    %v565 = vmul.f32 %v551, %v564
    %v566 = vadd.f32 %v565, 0.014752088
    %v567 = vmul.f32 %v551, %v566
    %v568 = vadd.f32 %v567, 0.112945676
    %v569 = vmul.f32 %v551, %v568
    %v570 = vadd.f32 %v569, 0.4994258
    %v571 = vmul.f32 %v551, %v570
    %v572 = vadd.f32 %v571, 1.0
    %v573 = vrcp.pop %v572
    %v574 = vmul.f32 %v572, %v573
    %v575 = vsub.f32 1.0, %v574
    %v576 = vmul.f32 %v573, %v575
    %v577 = vadd.f32 %v573, %v576
    %vm578 = vweird.f32 %v572
    %vm579 = vweird.f32 %v573
    %vm580 = vmor %vm578, %vm579
    %v581 = vsel %vm580, %v573, %v577
    %v582 = vand.u32 2147483647, %v572
    %vm583 = vcmp.eq.f32.partialorder %v582, 8.507059e+37
    %v584 = vand.u32 %v572, 2147483648
    %v585 = vor.u32 1.1754944e-38, %v584
    %v586 = vsel %vm583, %v585, %v581
    %v587 = vmul.f32 %v562, %v586
    %v588 = vmin.f32 %v587, 1.0
    %v589 = vmax.f32 %v588, -1.0
    %v590 = vadd.f32 %v589, 1.0
    %v591 = vmul.f32 %v548, %v590
    %v592 = vld [vmem:[#allocation10 + $0x12] sm:$0x1]
    %v593 = vperm.slane %v592, 0
    %v595 = vsel %vm105, %v591, 0
    %597 = vmatpush.msra.mxu0 0.0
    %598 = vmatpush.msra.mxu0 0.0
    %599 = vmatpush.msra.mxu0 0.0
    %600 = vmatpush.msra.mxu0 0.0
    %601 = vmatpush.msra.mxu0 0.0
    %602 = vmatpush.msra.mxu0 0.0
    %603 = vmatpush.msra.mxu0 0.0
    %604 = vmatpush.msra.mxu0 0.0
    %605 = vmatpush.msra.mxu0 0.0
    %606 = vmatpush.msra.mxu0 0.0
    %607 = vmatpush.msra.mxu0 0.0
    %608 = vmatpush.msra.mxu0 0.0
    %609 = vmatpush.msra.mxu0 0.0
    %610 = vmatpush.msra.mxu0 0.0
    %611 = vmatpush.msra.mxu0 %v491
    %612 = vmatpush.msra.mxu0 %v490
    %613 = vmatmul.f32.gmra.mxu0 %v595
    %v614 = vpop.f32.mrf.mxu0
    %v615 = vadd.f32 %v593, %v614
    %616 = vdwg.mxu0
    %v617 = vld [vmem:[#allocation10 + $0x13] sm:$0x1]
    %v618 = vld [vmem:[#allocation10 + $0x14] sm:$0x1]
    %v619 = vsel %vm105, %v615, 0.0
    %620 = vadd.xlane.f32.xlu0 %v619
    %v621 = vpop.xlane.xlu0 %620
    %v622 = vmul.f32 %v621, %v417
    %v623 = vmul.f32 %v615, %v615
    %v624 = vsel %vm105, %v623, 0.0
    %625 = vadd.xlane.f32.xlu0 %v624
    %v626 = vpop.xlane.xlu0 %625
    %v627 = vmul.f32 %v626, %v417
    %v628 = vmul.f32 %v622, %v622
    %v629 = vsub.f32 %v627, %v628
    %v630 = vmax.f32 %v629, 0.0
    %v631 = vsub.f32 %v615, %v622
    %v632 = vadd.f32 %v630, 1e-05
    %v633 = vrsqrt.pop %v632
    %v634 = vmul.f32 %v633, %v632
    %v635 = vmul.f32 %v634, %v633
    %v636 = vmul.f32 0.5, %v635
    %v637 = vsub.f32 1.5, %v636
    %v638 = vmul.f32 %v633, %v637
    %vm639 = vweird.f32 %v632
    %vm640 = vweird.f32 %v633
    %vm641 = vmor %vm639, %vm640
    %v642 = vsel %vm641, %v633, %v638
    %v643 = vmul.f32 %v631, %v642
    %v644 = vperm.slane %v617, 0
    %v645 = vmul.f32 %v643, %v644
    %v646 = vperm.slane %v618, 0
    %v647 = vadd.f32 %v645, %v646
    %v648 = vadd.f32 %v487, %v647
    %v649 = vsel %vm105, %v648, 0.0
    %650 = vst [vmem:[#allocation12] sm:$0xff] %v649
    %v651 = vld [vmem:[#allocation8 + $0x10] sm:$0xff]
    %v652 = vld [vmem:[#allocation8 + $0x28] sm:$0xff]
    %v653 = vld [vmem:[#allocation10 + $0x9] sm:$0x1]
    %v654 = vperm.slane %v653, 0
    %v656 = vsel %vm105, %v648, 0
    %658 = vmatpush.msra.mxu0 0.0
    %659 = vmatpush.msra.mxu0 0.0
    %660 = vmatpush.msra.mxu0 0.0
    %661 = vmatpush.msra.mxu0 0.0
    %662 = vmatpush.msra.mxu0 0.0
    %663 = vmatpush.msra.mxu0 0.0
    %664 = vmatpush.msra.mxu0 0.0
    %665 = vmatpush.msra.mxu0 0.0
    %666 = vmatpush.msra.mxu0 0.0
    %667 = vmatpush.msra.mxu0 0.0
    %668 = vmatpush.msra.mxu0 0.0
    %669 = vmatpush.msra.mxu0 0.0
    %670 = vmatpush.msra.mxu0 0.0
    %671 = vmatpush.msra.mxu0 0.0
    %672 = vmatpush.msra.mxu0 %v652
    %673 = vmatpush.msra.mxu0 %v651
    %674 = vmatmul.f32.gmra.mxu0 %v656
    %v675 = vpop.f32.mrf.mxu0
    %v676 = vadd.f32 %v654, %v675
    %677 = vdwg.mxu0
    %v678 = vld [vmem:[#allocation7 + $0x18] sm:$0xff]
    %v679 = vld [vmem:[#allocation7 + $0x40] sm:$0xff]
    %v680 = vld [vmem:[#allocation7 + $0x68] sm:$0xff]
    %v681 = vld [vmem:[#allocation7 + $0x90] sm:$0xff]
    %v683 = vsel %vm131, %v676, 0
    %685 = vmatpush.msra.mxu0 0.0
    %686 = vmatpush.msra.mxu0 0.0
    %687 = vmatpush.msra.mxu0 0.0
    %688 = vmatpush.msra.mxu0 0.0
    %689 = vmatpush.msra.mxu0 0.0
    %690 = vmatpush.msra.mxu0 0.0
    %691 = vmatpush.msra.mxu0 0.0
    %692 = vmatpush.msra.mxu0 0.0
    %693 = vmatpush.msra.mxu0 0.0
    %694 = vmatpush.msra.mxu0 0.0
    %695 = vmatpush.msra.mxu0 0.0
    %696 = vmatpush.msra.mxu0 0.0
    %697 = vmatpush.msra.mxu0 %v681
    %698 = vmatpush.msra.mxu0 %v680
    %699 = vmatpush.msra.mxu0 %v679
    %700 = vmatpush.msra.mxu0 %v678
    %701 = vmatmul.f32.gmra.mxu0 %v683
    %v702 = vpop.f32.mrf.mxu0
    %v703 = vadd.f32 0.0, %v702
    %704 = vdwg.mxu0
    %v705 = vmul.f32 %v676, %v676
    %v707 = vsel %vm131, %v705, 0
    %709 = vmatpush.msra.mxu0 0.0
    %710 = vmatpush.msra.mxu0 0.0
    %711 = vmatpush.msra.mxu0 0.0
    %712 = vmatpush.msra.mxu0 0.0
    %713 = vmatpush.msra.mxu0 0.0
    %714 = vmatpush.msra.mxu0 0.0
    %715 = vmatpush.msra.mxu0 0.0
    %716 = vmatpush.msra.mxu0 0.0
    %717 = vmatpush.msra.mxu0 0.0
    %718 = vmatpush.msra.mxu0 0.0
    %719 = vmatpush.msra.mxu0 0.0
    %720 = vmatpush.msra.mxu0 0.0
    %721 = vmatpush.msra.mxu0 %v681
    %722 = vmatpush.msra.mxu0 %v680
    %723 = vmatpush.msra.mxu0 %v679
    %724 = vmatpush.msra.mxu0 %v678
    %725 = vmatmul.f32.gmra.mxu0 %v707
    %v726 = vpop.f32.mrf.mxu0
    %v727 = vadd.f32 0.0, %v726
    %728 = vdwg.mxu0
    %v729 = vmul.f32 %v703, %v703
    %v730 = vsub.f32 %v727, %v729
    %v731 = vmax.f32 %v730, 0.0
    %v732 = vsub.f32 %v676, %v703
    %v733 = vadd.f32 %v731, 1e-05
    %v734 = vrsqrt.pop %v733
    %v735 = vmul.f32 %v734, %v733
    %v736 = vmul.f32 %v735, %v734
    %v737 = vmul.f32 0.5, %v736
    %v738 = vsub.f32 1.5, %v737
    %v739 = vmul.f32 %v734, %v738
    %vm740 = vweird.f32 %v733
    %vm741 = vweird.f32 %v734
    %vm742 = vmor %vm740, %vm741
    %v743 = vsel %vm742, %v734, %v739
    %v744 = vmul.f32 %v732, %v743
    %v745 = vld [vmem:[#allocation10 + $0xa] sm:$0x1]
    %v746 = vperm.slane %v745, 0
    %v747 = vmul.f32 %v744, %v746
    %v748 = vld [vmem:[#allocation10 + $0xb] sm:$0x1]
    %v749 = vperm.slane %v748, 0
    %v750 = vadd.f32 %v747, %v749
    %v751 = vmul.f32 %v750, 0.5
    %v752 = vmul.f32 %v750, 0.70710677
    %v753 = vmul.f32 %v752, %v752
    %v754 = vmin.f32 16.0, %v753
    %v755 = vmul.f32 %v754, 2.1237322e-06
    %v756 = vadd.f32 %v755, 0.00028619796
    %v757 = vmul.f32 %v754, %v756
    %v758 = vadd.f32 %v757, 0.0036580483
    %v759 = vmul.f32 %v754, %v758
    %v760 = vadd.f32 %v759, 0.05243302
    %v761 = vmul.f32 %v754, %v760
    %v762 = vadd.f32 %v761, 0.18741608
    %v763 = vmul.f32 %v754, %v762
    %v764 = vadd.f32 %v763, 1.1283791
    %v765 = vmul.f32 %v752, %v764
    %v766 = vmul.f32 %v754, 3.8918573e-05
    %v767 = vadd.f32 %v766, 0.001143296
    %v768 = vmul.f32 %v754, %v767
    %v769 = vadd.f32 %v768, 0.014752088
    %v770 = vmul.f32 %v754, %v769
    %v771 = vadd.f32 %v770, 0.112945676
    %v772 = vmul.f32 %v754, %v771
    %v773 = vadd.f32 %v772, 0.4994258
    %v774 = vmul.f32 %v754, %v773
    %v775 = vadd.f32 %v774, 1.0
    %v776 = vrcp.pop %v775
    %v777 = vmul.f32 %v775, %v776
    %v778 = vsub.f32 1.0, %v777
    %v779 = vmul.f32 %v776, %v778
    %v780 = vadd.f32 %v776, %v779
    %vm781 = vweird.f32 %v775
    %vm782 = vweird.f32 %v776
    %vm783 = vmor %vm781, %vm782
    %v784 = vsel %vm783, %v776, %v780
    %v785 = vand.u32 2147483647, %v775
    %vm786 = vcmp.eq.f32.partialorder %v785, 8.507059e+37
    %v787 = vand.u32 %v775, 2147483648
    %v788 = vor.u32 1.1754944e-38, %v787
    %v789 = vsel %vm786, %v788, %v784
    %v790 = vmul.f32 %v765, %v789
    %v791 = vmin.f32 %v790, 1.0
    %v792 = vmax.f32 %v791, -1.0
    %v793 = vadd.f32 %v792, 1.0
    %v794 = vmul.f32 %v751, %v793
    %v795 = vld [vmem:[#allocation7 + $0x20] sm:$0xff]
    %v796 = vld [vmem:[#allocation7 + $0x48] sm:$0xff]
    %v797 = vld [vmem:[#allocation7 + $0x70] sm:$0xff]
    %v798 = vld [vmem:[#allocation7 + $0x98] sm:$0xff]
    %v799 = vld [vmem:[#allocation10 + $0x15] sm:$0x1]
    %v800 = vperm.slane %v799, 0
    %v802 = vsel %vm131, %v794, 0
    %804 = vmatpush.msra.mxu0 0.0
    %805 = vmatpush.msra.mxu0 0.0
    %806 = vmatpush.msra.mxu0 0.0
    %807 = vmatpush.msra.mxu0 0.0
    %808 = vmatpush.msra.mxu0 0.0
    %809 = vmatpush.msra.mxu0 0.0
    %810 = vmatpush.msra.mxu0 0.0
    %811 = vmatpush.msra.mxu0 0.0
    %812 = vmatpush.msra.mxu0 0.0
    %813 = vmatpush.msra.mxu0 0.0
    %814 = vmatpush.msra.mxu0 0.0
    %815 = vmatpush.msra.mxu0 0.0
    %816 = vmatpush.msra.mxu0 %v798
    %817 = vmatpush.msra.mxu0 %v797
    %818 = vmatpush.msra.mxu0 %v796
    %819 = vmatpush.msra.mxu0 %v795
    %820 = vmatmul.f32.gmra.mxu0 %v802
    %v821 = vpop.f32.mrf.mxu0
    %v822 = vadd.f32 %v800, %v821
    %823 = vdwg.mxu0
    %824 = vst [vmem:[#allocation11] sm:$0xff] %v822
    // Predicated region
    $region42: #{tpu_custom_call.1} parent=1 // pred_check
      _
    $region43: #{tpu_custom_call.1} parent=1 // pred_check_branch
      %826 = sbr.rel (0) target = $region45
    $region44: #{tpu_custom_call.1} parent=1 // pred_region
      %828 = vsyncadd [#allocation4], 0
      %s830 = sshll.u32 [#allocation11], 4
      %s831 = int_to_ptr.vmem [resolvable:$true] %s830
      %s832 = sshll.u32 %s5, 4
      %s833 = int_to_ptr.hbm [resolvable:$true] %s832
      %835 = dma.vmem_to_hbm [thread:$0]  %s831, 128, %s833, [#allocation4]
    $region45: #{tpu_custom_call.1} parent=1 // pred_fallthru
      _
    // Predicated region
    $region46: #{tpu_custom_call.1} parent=1 // pred_check
      _
    $region47: #{tpu_custom_call.1} parent=1 // pred_check_branch
      %837 = sbr.rel (0) target = $region49
    $region48: #{tpu_custom_call.1} parent=1 // pred_region
      %839 = vsyncadd [#allocation13], 0
      %s841 = sshll.u32 [#allocation12], 4
      %s842 = int_to_ptr.vmem [resolvable:$true] %s841
      %s843 = sshll.u32 %s6, 4
      %s844 = int_to_ptr.hbm [resolvable:$true] %s843
      %846 = dma.vmem_to_hbm [thread:$0]  %s842, 128, %s844, [#allocation13]
    $region49: #{tpu_custom_call.1} parent=1 // pred_fallthru
      _
    // Predicated region
    $region50: #{tpu_custom_call.1} parent=1 // pred_check
      _
    $region51: #{tpu_custom_call.1} parent=1 // pred_check_branch
      %848 = sbr.rel (0) target = $region53
    $region52: #{tpu_custom_call.1} parent=1 // pred_region
      %850 = dma.done [#allocation4], 128
    $region53: #{tpu_custom_call.1} parent=1 // pred_fallthru
      _
    // Predicated region
    $region54: #{tpu_custom_call.1} parent=1 // pred_check
      _
    $region55: #{tpu_custom_call.1} parent=1 // pred_check_branch
      %852 = sbr.rel (0) target = $region57
    $region56: #{tpu_custom_call.1} parent=1 // pred_region
      %854 = dma.done [#allocation13], 128
    $region57: #{tpu_custom_call.1} parent=1 // pred_fallthru
      _
    %855 = vsyncpa [#allocation3], 1
    %856 = vsyncpa [#allocation6], 1
    %857 = vsyncpa [#allocation9], 1
    %858 = vsyncpa [#allocation4], 1
    %859 = vsyncpa [#allocation13], 1

</llo_original>
